<compile_context>
chip_gen: v7x
topology: tpu7x:2x2x1
jax: 0.10.0
libtpu: 0.0.40
codegen_flags: <defaults>
</compile_context>

<pallas_src>
import functools

import jax
import jax.numpy as jnp
from jax.experimental import pallas as pl
from jax.experimental.pallas import tpu as pltpu

# ----------------------------- configuration --------------------------------
VOCAB = 64
SEQ = 8            # sequence length of each term
HIDDEN = 32        # bert_encoder.config.hidden_size
N_NODES = 16       # batch nodes + sampled neighbours (input to graph encoder)
BATCH = 8          # batch_size
NUM_OUTER = 2      # graphsage_num_outer_layers
NUM_INNER = 1      # graphsage_num_inner_layers
N_LAYERS = NUM_OUTER * NUM_INNER
ALPHA, BETA, BASE = 2.0, 50.0, 0.5   # MultiSimilarityLoss(alpha=2, beta=50, base=0.5)
# graphsage_num_hidden_channels == HIDDEN because set_out_input_dim_equal=True
# TODO(synk): graphsage_dropout_p ignored (deterministic eval path, no RNG dropout).
# TODO(synk): HIDDEN=32 keeps vregs lane-sparse; real models with hidden>=128 map
#             directly onto full 128-lane tiles with no code change.

_VMEM = pl.BlockSpec(memory_space=pltpu.MemorySpace.VMEM)


# ------------------------------ Pallas kernels -------------------------------
def _text_cls_kernel(ids_ref, mask_ref, emb_ref, w_ref, b_ref, o_ref):
    """Fused CLS-token embedding gather + mask + dense + relu for both views."""
    m = ids_ref.shape[0]
    vocab = emb_ref.shape[0]
    ids = ids_ref[...]                                               # [M, 1] int32
    # embedding gather as one-hot @ table (exact, MXU-friendly, no gather op)
    onehot = (ids == jax.lax.broadcasted_iota(jnp.int32, (m, vocab), 1)
              ).astype(jnp.float32)                                  # [M, V]
    cls = jnp.dot(onehot, emb_ref[...], preferred_element_type=jnp.float32)
    cls = cls * mask_ref[...]                                        # zero masked CLS
    y = jnp.dot(cls.astype(jnp.bfloat16), w_ref[...].astype(jnp.bfloat16),
                preferred_element_type=jnp.float32) + b_ref[...]
    o_ref[...] = jnp.maximum(y, 0.0)


def _sage_stack_kernel(x_ref, a_ref, ws_ref, wn_ref, b_ref, o_ref):
    """All SAGEConv layers for one view, activations resident in VMEM/vregs."""
    h = x_ref[0]                                                     # [N, H]
    a = a_ref[...]                                                   # [N, N]
    n_layers = ws_ref.shape[0]
    for l in range(n_layers):                                        # static unroll
        agg = jnp.dot(a, h, preferred_element_type=jnp.float32)      # mean aggregation
        y = (jnp.dot(h.astype(jnp.bfloat16), ws_ref[l].astype(jnp.bfloat16),
                     preferred_element_type=jnp.float32)
             + jnp.dot(agg.astype(jnp.bfloat16), wn_ref[l].astype(jnp.bfloat16),
                       preferred_element_type=jnp.float32)
             + b_ref[l])
        if l < n_layers - 1:
            y = jnp.maximum(y, 0.0)
        h = y
    o_ref[0] = h


def _ms_loss_kernel(sel_a_ref, sel_b_ref, labc_ref, labr_ref,
                    ea_ref, eb_ref, o_ref, e_sc):
    """MultiSimilarity loss for one (anchor-set) pair, reduced to a scalar.

    sel_a_ref / sel_b_ref are the SMEM scalar-prefetch selector tables (only
    consumed by the index_maps; unused in the body).
    """
    del sel_a_ref, sel_b_ref
    b = ea_ref.shape[1]
    m = 2 * b
    # assemble the 2B anchors in VMEM scratch (avoids a materialized pairs array)
    e_sc[pl.ds(0, b), :] = ea_ref[0]
    e_sc[pl.ds(b, b), :] = eb_ref[0]
    e = e_sc[...]                                                    # [2B, H]
    en = e * jax.lax.rsqrt(jnp.sum(e * e, axis=-1, keepdims=True) + 1e-12)
    # cosine-sim matmul contracting last dims (no explicit transpose)
    sim = jax.lax.dot_general(en, en, (((1,), (1,)), ((), ())),
                              preferred_element_type=jnp.float32)    # [M, M]
    same = labc_ref[...] == labr_ref[...]                            # [M, M] bool
    eye = (jax.lax.broadcasted_iota(jnp.int32, (m, m), 0)
           == jax.lax.broadcasted_iota(jnp.int32, (m, m), 1))
    pos_mask = jnp.logical_and(same, jnp.logical_not(eye))
    neg_mask = jnp.logical_not(same)
    pos_sum = jnp.sum(jnp.where(pos_mask, jnp.exp(-ALPHA * (sim - BASE)), 0.0),
                      axis=-1, keepdims=True)
    neg_sum = jnp.sum(jnp.where(neg_mask, jnp.exp(BETA * (sim - BASE)), 0.0),
                      axis=-1, keepdims=True)
    per_anchor = (jnp.log(1.0 + pos_sum) / ALPHA
                  + jnp.log(1.0 + neg_sum) / BETA)                   # [M, 1]
    o_ref[0] = jnp.sum(per_anchor, axis=0, keepdims=True) / float(m)  # (1, 1)


# ------------------------------ kernel wrappers -------------------------------
def text_encode_both_views(params, ids_1, mask_1, ids_2, mask_2):
    """Stand-in bert_encoder with agg_mode='cls'; both term views in one call."""
    # TODO(synk): full BERT transformer stack not implemented; a single dense
    # layer over the CLS token embedding stands in.
    cls_ids = jnp.concatenate([ids_1[:, :1], ids_2[:, :1]], axis=0).astype(jnp.int32)
    cls_mask = jnp.concatenate([mask_1[:, :1], mask_2[:, :1]], axis=0).astype(jnp.float32)
    return pl.pallas_call(
        _text_cls_kernel,
        out_shape=jax.ShapeDtypeStruct((cls_ids.shape[0], HIDDEN), jnp.float32),
        in_specs=[_VMEM, _VMEM, _VMEM, _VMEM, _VMEM],
        out_specs=_VMEM,
    )(cls_ids, cls_mask, params["emb_table"], params["enc_w"], params["enc_b"])


def graph_encode_both_views(params, x_views, adj_norm):
    """GraphSAGEEncoder over both views; grid axis of 2 maps views to TCs."""
    _, n, h = x_views.shape
    w_self, w_neigh, b = params["sage_w_self"], params["sage_w_neigh"], params["sage_b"]
    return pl.pallas_call(
        _sage_stack_kernel,
        out_shape=jax.ShapeDtypeStruct((2, n, h), jnp.float32),
        grid=(2,),
        in_specs=[
            pl.BlockSpec((1, n, h), lambda v: (v, 0, 0)),
            pl.BlockSpec((n, n), lambda v: (0, 0)),
            pl.BlockSpec(w_self.shape, lambda v: (0, 0, 0)),
            pl.BlockSpec(w_neigh.shape, lambda v: (0, 0, 0)),
            pl.BlockSpec(b.shape, lambda v: (0, 0, 0)),
        ],
        out_specs=pl.BlockSpec((1, n, h), lambda v: (v, 0, 0)),
        compiler_params=pltpu.CompilerParams(dimension_semantics=("parallel",)),
    )(x_views, adj_norm, w_self, w_neigh, b)


def fused_multi_similarity_losses(views, lab_col, lab_row, batch_size):
    """losses.MultiSimilarityLoss(alpha=2, beta=50, base=0.5) for all 4 pairs.

    views: (4, N, H) = [text_1, text_2, graph_1, graph_2]; only the first
    batch_size rows of each view participate (selected by the BlockSpecs).
    """
    # TODO(synk): TripletMarginMiner pair mining not implemented; loss uses all pairs.
    _, n, h = views.shape
    n_pairs = 4
    # which view feeds the first / second half of the 2B anchors for each pair
    sel_a = jnp.array([0, 2, 0, 1], jnp.int32)   # (t1,t2) (g1,g2) (t1,g1) (t2,g2)
    sel_b = jnp.array([1, 3, 2, 3], jnp.int32)
    out = pl.pallas_call(
        _ms_loss_kernel,
        out_shape=jax.ShapeDtypeStruct((n_pairs, 1, 1), jnp.float32),
        grid_spec=pltpu.PrefetchScalarGridSpec(
            num_scalar_prefetch=2,
            grid=(n_pairs,),
            in_specs=[
                pl.BlockSpec((2 * batch_size, 1), lambda i, sa, sb: (0, 0)),
                pl.BlockSpec((1, 2 * batch_size), lambda i, sa, sb: (0, 0)),
                pl.BlockSpec((1, batch_size, h), lambda i, sa, sb: (sa[i], 0, 0)),
                pl.BlockSpec((1, batch_size, h), lambda i, sa, sb: (sb[i], 0, 0)),
            ],
            out_specs=pl.BlockSpec((1, 1, 1), lambda i, sa, sb: (i, 0, 0)),
            scratch_shapes=[pltpu.VMEM((2 * batch_size, h), jnp.float32)],
        ),
        compiler_params=pltpu.CompilerParams(dimension_semantics=("parallel",)),
    )(sel_a, sel_b, lab_col, lab_row, views, views)
    return out[:, 0, 0]                                              # [4]


# ------------------------------ model pieces ---------------------------------
def init_params(key):
    ks = jax.random.split(key, 2 + 2 * N_LAYERS)
    params = {
        "emb_table": jax.random.normal(ks[0], (VOCAB, HIDDEN), jnp.float32) * 0.02,
        "enc_w": jax.random.normal(ks[1], (HIDDEN, HIDDEN), jnp.float32) / jnp.sqrt(HIDDEN),
        "enc_b": jnp.zeros((1, HIDDEN), jnp.float32),
    }
    params["sage_w_self"] = jnp.stack(
        [jax.random.normal(ks[2 + 2 * i], (HIDDEN, HIDDEN), jnp.float32) / jnp.sqrt(HIDDEN)
         for i in range(N_LAYERS)])
    params["sage_w_neigh"] = jnp.stack(
        [jax.random.normal(ks[3 + 2 * i], (HIDDEN, HIDDEN), jnp.float32) / jnp.sqrt(HIDDEN)
         for i in range(N_LAYERS)])
    params["sage_b"] = jnp.zeros((N_LAYERS, 1, HIDDEN), jnp.float32)
    return params


def graphsage_gebert_forward(params, term_1_input_ids, term_1_att_masks,
                             term_2_input_ids, term_2_att_masks,
                             concept_ids, adjs, batch_size):
    n = term_1_input_ids.shape[0]

    # text branch (both views in one fused kernel) -> free reshape to (2, N, H)
    t = text_encode_both_views(params, term_1_input_ids, term_1_att_masks,
                               term_2_input_ids, term_2_att_masks).reshape(2, n, HIDDEN)

    # graph branch (both views in one fused, gridded kernel) -> (2, N, H)
    g = graph_encode_both_views(params, t, adjs)

    # single (4, N, H) view tensor feeding the fused loss kernel
    views = jnp.concatenate([t, g], axis=0)

    lab = concept_ids[:batch_size].astype(jnp.int32)
    lab2 = jnp.concatenate([lab, lab], axis=0)
    lab_col = lab2.reshape(2 * batch_size, 1)
    lab_row = lab2.reshape(1, 2 * batch_size)

    # all four MultiSimilarity losses share one kernel (grid over pairs)
    losses = fused_multi_similarity_losses(views, lab_col, lab_row, batch_size)

    text_loss = losses[0]
    graph_loss = losses[1]
    intermodal_loss = 0.5 * (losses[2] + losses[3])
    return text_loss, graph_loss, intermodal_loss


# ---------------------------------- main --------------------------------------
if __name__ == "__main__":
    key = jax.random.PRNGKey(0)
    k_par, k_id1, k_id2, k_adj = jax.random.split(key, 4)

    params = init_params(k_par)

    term_1_input_ids = jax.random.randint(k_id1, (N_NODES, SEQ), 0, VOCAB, dtype=jnp.int32)
    term_2_input_ids = jax.random.randint(k_id2, (N_NODES, SEQ), 0, VOCAB, dtype=jnp.int32)
    term_1_att_masks = jnp.ones((N_NODES, SEQ), jnp.int32)
    term_2_att_masks = jnp.ones((N_NODES, SEQ), jnp.int32)
    concept_ids = jnp.arange(N_NODES, dtype=jnp.int32)

    # dense row-normalized adjacency standing in for the NeighborSampler `adjs`
    adj = (jax.random.uniform(k_adj, (N_NODES, N_NODES)) < 0.25).astype(jnp.float32)
    adj = adj * (1.0 - jnp.eye(N_NODES, dtype=jnp.float32))                  # no self loops
    adj = adj + jnp.roll(jnp.eye(N_NODES, dtype=jnp.float32), 1, axis=1)     # guarantee a neighbour
    deg = jnp.maximum(jnp.sum(adj, axis=1, keepdims=True), 1.0)
    adj_norm = adj / deg                                                     # mean aggregation

    fwd = jax.jit(functools.partial(graphsage_gebert_forward, batch_size=BATCH))
    text_loss, graph_loss, intermodal_loss = fwd(
        params, term_1_input_ids, term_1_att_masks,
        term_2_input_ids, term_2_att_masks, concept_ids, adj_norm)

    jax.block_until_ready((text_loss, graph_loss, intermodal_loss))
    assert text_loss.shape == () and graph_loss.shape == () and intermodal_loss.shape == ()
    assert jnp.isfinite(text_loss) and jnp.isfinite(graph_loss) and jnp.isfinite(intermodal_loss)
    print("KERNEL_OK")
</pallas_src>

<mosaic_0001>
module attributes {stable_mosaic.version = 11 : i64} {
  func.func @_text_cls_kernel(%arg0: memref<32x1xi32, #tpu.memory_space<vmem>>, %arg1: memref<32x1xf32, #tpu.memory_space<vmem>>, %arg2: memref<64x32xf32, #tpu.memory_space<vmem>>, %arg3: memref<32x32xf32, #tpu.memory_space<vmem>>, %arg4: memref<1x32xf32, #tpu.memory_space<vmem>>, %arg5: memref<32x32xf32, #tpu.memory_space<vmem>>) attributes {dimension_semantics = [], scalar_prefetch = 0 : i64, scratch_operands = 0 : i64, tpu.core_type = #tpu.core_type<tc>} {
    %c0 = arith.constant 0 : index
    %c0_0 = arith.constant 0 : index
    %0 = vector.load %arg0[%c0, %c0_0] : memref<32x1xi32, #tpu.memory_space<vmem>>, vector<32x1xi32>
    %1 = tpu.iota {dimensions = array<i32: 1>} : vector<32x64xi32>
    %2 = vector.broadcast %0 : vector<32x1xi32> to vector<32x64xi32>
    %3 = arith.cmpi eq, %2, %1 : vector<32x64xi32>
    %4 = arith.extui %3 : vector<32x64xi1> to vector<32x64xi32>
    %5 = arith.sitofp %4 : vector<32x64xi32> to vector<32x64xf32>
    %c0_1 = arith.constant 0 : index
    %c0_2 = arith.constant 0 : index
    %6 = vector.load %arg2[%c0_1, %c0_2] : memref<64x32xf32, #tpu.memory_space<vmem>>, vector<64x32xf32>
    %cst = arith.constant dense<0.000000e+00> : vector<32x32xf32>
    %7 = tpu.matmul %5, %6, %cst {dimension_numbers = #tpu.dot_dimension_numbers<[1], [0], [0], [1], [0, 0, 1, 1], [], []>} : vector<32x64xf32>, vector<64x32xf32>, vector<32x32xf32> -> vector<32x32xf32>
    %c0_3 = arith.constant 0 : index
    %c0_4 = arith.constant 0 : index
    %8 = vector.load %arg1[%c0_3, %c0_4] : memref<32x1xf32, #tpu.memory_space<vmem>>, vector<32x1xf32>
    %9 = vector.broadcast %8 : vector<32x1xf32> to vector<32x32xf32>
    %10 = arith.mulf %7, %9 : vector<32x32xf32>
    %11 = arith.truncf %10 : vector<32x32xf32> to vector<32x32xbf16>
    %c0_5 = arith.constant 0 : index
    %c0_6 = arith.constant 0 : index
    %12 = vector.load %arg3[%c0_5, %c0_6] : memref<32x32xf32, #tpu.memory_space<vmem>>, vector<32x32xf32>
    %13 = arith.truncf %12 : vector<32x32xf32> to vector<32x32xbf16>
    %cst_7 = arith.constant dense<0.000000e+00> : vector<32x32xf32>
    %14 = tpu.matmul %11, %13, %cst_7 {dimension_numbers = #tpu.dot_dimension_numbers<[1], [0], [0], [1], [0, 0, 1, 1], [], []>} : vector<32x32xbf16>, vector<32x32xbf16>, vector<32x32xf32> -> vector<32x32xf32>
    %c0_8 = arith.constant 0 : index
    %c0_9 = arith.constant 0 : index
    %15 = vector.load %arg4[%c0_8, %c0_9] : memref<1x32xf32, #tpu.memory_space<vmem>>, vector<1x32xf32>
    %16 = vector.broadcast %15 : vector<1x32xf32> to vector<32x32xf32>
    %17 = arith.addf %14, %16 : vector<32x32xf32>
    %cst_10 = arith.constant 0.000000e+00 : f32
    %18 = vector.broadcast %cst_10 : f32 to vector<32x32xf32>
    %19 = arith.maximumf %17, %18 : vector<32x32xf32>
    %c0_11 = arith.constant 0 : index
    %c0_12 = arith.constant 0 : index
    %20 = vector.load %arg5[%c0_11, %c0_12] : memref<32x32xf32, #tpu.memory_space<vmem>>, vector<32x32xf32>
    tpu.vector_store %arg5[%c0_11, %c0_12], %19 {strides = array<i32>} : memref<32x32xf32, #tpu.memory_space<vmem>>, vector<32x32xf32>,
    return
  }
}

module attributes {stable_mosaic.version = 11 : i64} {
  func.func @_sage_stack_kernel(%arg0: i32, %arg1: memref<1x16x32xf32, #tpu.memory_space<vmem>>, %arg2: memref<16x16xf32, #tpu.memory_space<vmem>>, %arg3: memref<2x32x32xf32, #tpu.memory_space<vmem>>, %arg4: memref<2x32x32xf32, #tpu.memory_space<vmem>>, %arg5: memref<2x1x32xf32, #tpu.memory_space<vmem>>, %arg6: memref<1x16x32xf32, #tpu.memory_space<vmem>>) attributes {dimension_semantics = [#tpu.dimension_semantics<parallel>], iteration_bounds = array<i64: 2>, scalar_prefetch = 0 : i64, scratch_operands = 0 : i64, tpu.core_type = #tpu.core_type<tc>, window_params = [{transform_indices = @transform_0, window_bounds = array<i64: 1, 16, 32>}, {pipeline_mode = #tpu.pipeline_mode<synchronous>, transform_indices = @transform_1, window_bounds = array<i64: 16, 16>}, {pipeline_mode = #tpu.pipeline_mode<synchronous>, transform_indices = @transform_2, window_bounds = array<i64: 2, 32, 32>}, {pipeline_mode = #tpu.pipeline_mode<synchronous>, transform_indices = @transform_3, window_bounds = array<i64: 2, 32, 32>}, {pipeline_mode = #tpu.pipeline_mode<synchronous>, transform_indices = @transform_4, window_bounds = array<i64: 2, 1, 32>}, {transform_indices = @transform_5, window_bounds = array<i64: 1, 16, 32>}]} {
    %c0 = arith.constant 0 : index
    %c0_0 = arith.constant 0 : index
    %c0_1 = arith.constant 0 : index
    %0 = vector.load %arg1[%c0, %c0_0, %c0_1] : memref<1x16x32xf32, #tpu.memory_space<vmem>>, vector<1x16x32xf32>
    %1 = vector.shape_cast %0 : vector<1x16x32xf32> to vector<16x32xf32>
    %c0_2 = arith.constant 0 : index
    %c0_3 = arith.constant 0 : index
    %2 = vector.load %arg2[%c0_2, %c0_3] : memref<16x16xf32, #tpu.memory_space<vmem>>, vector<16x16xf32>
    %cst = arith.constant dense<0.000000e+00> : vector<16x32xf32>
    %3 = tpu.matmul %2, %1, %cst {dimension_numbers = #tpu.dot_dimension_numbers<[1], [0], [0], [1], [0, 0, 1, 1], [], []>} : vector<16x16xf32>, vector<16x32xf32>, vector<16x32xf32> -> vector<16x32xf32>
    %4 = arith.truncf %1 : vector<16x32xf32> to vector<16x32xbf16>
    %c0_4 = arith.constant 0 : index
    %c0_5 = arith.constant 0 : index
    %c0_6 = arith.constant 0 : index
    %5 = vector.load %arg3[%c0_4, %c0_5, %c0_6] : memref<2x32x32xf32, #tpu.memory_space<vmem>>, vector<1x32x32xf32>
    %6 = vector.shape_cast %5 : vector<1x32x32xf32> to vector<32x32xf32>
    %7 = arith.truncf %6 : vector<32x32xf32> to vector<32x32xbf16>
    %cst_7 = arith.constant dense<0.000000e+00> : vector<16x32xf32>
    %8 = tpu.matmul %4, %7, %cst_7 {dimension_numbers = #tpu.dot_dimension_numbers<[1], [0], [0], [1], [0, 0, 1, 1], [], []>} : vector<16x32xbf16>, vector<32x32xbf16>, vector<16x32xf32> -> vector<16x32xf32>
    %9 = arith.truncf %3 : vector<16x32xf32> to vector<16x32xbf16>
    %c0_8 = arith.constant 0 : index
    %c0_9 = arith.constant 0 : index
    %c0_10 = arith.constant 0 : index
    %10 = vector.load %arg4[%c0_8, %c0_9, %c0_10] : memref<2x32x32xf32, #tpu.memory_space<vmem>>, vector<1x32x32xf32>
    %11 = vector.shape_cast %10 : vector<1x32x32xf32> to vector<32x32xf32>
    %12 = arith.truncf %11 : vector<32x32xf32> to vector<32x32xbf16>
    %cst_11 = arith.constant dense<0.000000e+00> : vector<16x32xf32>
    %13 = tpu.matmul %9, %12, %cst_11 {dimension_numbers = #tpu.dot_dimension_numbers<[1], [0], [0], [1], [0, 0, 1, 1], [], []>} : vector<16x32xbf16>, vector<32x32xbf16>, vector<16x32xf32> -> vector<16x32xf32>
    %14 = arith.addf %8, %13 : vector<16x32xf32>
    %c0_12 = arith.constant 0 : index
    %c0_13 = arith.constant 0 : index
    %c0_14 = arith.constant 0 : index
    %15 = vector.load %arg5[%c0_12, %c0_13, %c0_14] : memref<2x1x32xf32, #tpu.memory_space<vmem>>, vector<1x1x32xf32>
    %16 = vector.shape_cast %15 : vector<1x1x32xf32> to vector<1x32xf32>
    %17 = vector.broadcast %16 : vector<1x32xf32> to vector<16x32xf32>
    %18 = arith.addf %14, %17 : vector<16x32xf32>
    %cst_15 = arith.constant 0.000000e+00 : f32
    %19 = vector.broadcast %cst_15 : f32 to vector<16x32xf32>
    %20 = arith.maximumf %18, %19 : vector<16x32xf32>
    %cst_16 = arith.constant dense<0.000000e+00> : vector<16x32xf32>
    %21 = tpu.matmul %2, %20, %cst_16 {dimension_numbers = #tpu.dot_dimension_numbers<[1], [0], [0], [1], [0, 0, 1, 1], [], []>} : vector<16x16xf32>, vector<16x32xf32>, vector<16x32xf32> -> vector<16x32xf32>
    %22 = arith.truncf %20 : vector<16x32xf32> to vector<16x32xbf16>
    %c1 = arith.constant 1 : index
    %c0_17 = arith.constant 0 : index
    %c0_18 = arith.constant 0 : index
    %23 = vector.load %arg3[%c1, %c0_17, %c0_18] : memref<2x32x32xf32, #tpu.memory_space<vmem>>, vector<1x32x32xf32>
    %24 = vector.shape_cast %23 : vector<1x32x32xf32> to vector<32x32xf32>
    %25 = arith.truncf %24 : vector<32x32xf32> to vector<32x32xbf16>
    %cst_19 = arith.constant dense<0.000000e+00> : vector<16x32xf32>
    %26 = tpu.matmul %22, %25, %cst_19 {dimension_numbers = #tpu.dot_dimension_numbers<[1], [0], [0], [1], [0, 0, 1, 1], [], []>} : vector<16x32xbf16>, vector<32x32xbf16>, vector<16x32xf32> -> vector<16x32xf32>
    %27 = arith.truncf %21 : vector<16x32xf32> to vector<16x32xbf16>
    %c1_20 = arith.constant 1 : index
    %c0_21 = arith.constant 0 : index
    %c0_22 = arith.constant 0 : index
    %28 = vector.load %arg4[%c1_20, %c0_21, %c0_22] : memref<2x32x32xf32, #tpu.memory_space<vmem>>, vector<1x32x32xf32>
    %29 = vector.shape_cast %28 : vector<1x32x32xf32> to vector<32x32xf32>
    %30 = arith.truncf %29 : vector<32x32xf32> to vector<32x32xbf16>
    %cst_23 = arith.constant dense<0.000000e+00> : vector<16x32xf32>
    %31 = tpu.matmul %27, %30, %cst_23 {dimension_numbers = #tpu.dot_dimension_numbers<[1], [0], [0], [1], [0, 0, 1, 1], [], []>} : vector<16x32xbf16>, vector<32x32xbf16>, vector<16x32xf32> -> vector<16x32xf32>
    %32 = arith.addf %26, %31 : vector<16x32xf32>
    %c1_24 = arith.constant 1 : index
    %c0_25 = arith.constant 0 : index
    %c0_26 = arith.constant 0 : index
    %33 = vector.load %arg5[%c1_24, %c0_25, %c0_26] : memref<2x1x32xf32, #tpu.memory_space<vmem>>, vector<1x1x32xf32>
    %34 = vector.shape_cast %33 : vector<1x1x32xf32> to vector<1x32xf32>
    %35 = vector.broadcast %34 : vector<1x32xf32> to vector<16x32xf32>
    %36 = arith.addf %32, %35 : vector<16x32xf32>
    %c0_27 = arith.constant 0 : index
    %c0_28 = arith.constant 0 : index
    %c0_29 = arith.constant 0 : index
    %37 = vector.load %arg6[%c0_27, %c0_28, %c0_29] : memref<1x16x32xf32, #tpu.memory_space<vmem>>, vector<1x16x32xf32>
    %38 = vector.shape_cast %37 : vector<1x16x32xf32> to vector<16x32xf32>
    %39 = vector.shape_cast %36 : vector<16x32xf32> to vector<1x16x32xf32>
    tpu.vector_store %arg6[%c0_27, %c0_28, %c0_29], %39 {strides = array<i32>} : memref<1x16x32xf32, #tpu.memory_space<vmem>>, vector<1x16x32xf32>,
    return
  }
  func.func @transform_0(%arg0: i32) -> (i32, i32, i32) {
    %c0_i32 = arith.constant 0 : i32
    %c0_i32_0 = arith.constant 0 : i32
    %c0_i32_1 = arith.constant 0 : i32
    return %arg0, %c0_i32, %c0_i32_0 : i32, i32, i32
  }
  func.func @transform_1(%arg0: i32) -> (i32, i32) {
    %c0_i32 = arith.constant 0 : i32
    %c0_i32_0 = arith.constant 0 : i32
    %c0_i32_1 = arith.constant 0 : i32
    return %c0_i32, %c0_i32_0 : i32, i32
  }
  func.func @transform_2(%arg0: i32) -> (i32, i32, i32) {
    %c0_i32 = arith.constant 0 : i32
    %c0_i32_0 = arith.constant 0 : i32
    %c0_i32_1 = arith.constant 0 : i32
    %c0_i32_2 = arith.constant 0 : i32
    return %c0_i32, %c0_i32_0, %c0_i32_1 : i32, i32, i32
  }
  func.func @transform_3(%arg0: i32) -> (i32, i32, i32) {
    %c0_i32 = arith.constant 0 : i32
    %c0_i32_0 = arith.constant 0 : i32
    %c0_i32_1 = arith.constant 0 : i32
    %c0_i32_2 = arith.constant 0 : i32
    return %c0_i32, %c0_i32_0, %c0_i32_1 : i32, i32, i32
  }
  func.func @transform_4(%arg0: i32) -> (i32, i32, i32) {
    %c0_i32 = arith.constant 0 : i32
    %c0_i32_0 = arith.constant 0 : i32
    %c0_i32_1 = arith.constant 0 : i32
    %c0_i32_2 = arith.constant 0 : i32
    return %c0_i32, %c0_i32_0, %c0_i32_1 : i32, i32, i32
  }
  func.func @transform_5(%arg0: i32) -> (i32, i32, i32) {
    %c0_i32 = arith.constant 0 : i32
    %c0_i32_0 = arith.constant 0 : i32
    %c0_i32_1 = arith.constant 0 : i32
    return %arg0, %c0_i32, %c0_i32_0 : i32, i32, i32
  }
}

module attributes {stable_mosaic.version = 11 : i64} {
  func.func @_ms_loss_kernel(%arg0: i32, %arg1: memref<4xi32, #tpu.memory_space<smem>>, %arg2: memref<4xi32, #tpu.memory_space<smem>>, %arg3: memref<16x1xi32, #tpu.memory_space<vmem>>, %arg4: memref<1x16xi32, #tpu.memory_space<vmem>>, %arg5: memref<1x8x32xf32, #tpu.memory_space<vmem>>, %arg6: memref<1x8x32xf32, #tpu.memory_space<vmem>>, %arg7: memref<1x1x1xf32, #tpu.memory_space<vmem>>, %arg8: memref<16x32xf32, #tpu.memory_space<vmem>>) attributes {dimension_semantics = [#tpu.dimension_semantics<parallel>], iteration_bounds = array<i64: 4>, scalar_prefetch = 2 : i64, scratch_operands = 1 : i64, tpu.core_type = #tpu.core_type<tc>, window_params = [{pipeline_mode = #tpu.pipeline_mode<synchronous>, transform_indices = @transform_0, window_bounds = array<i64: 16, 1>}, {pipeline_mode = #tpu.pipeline_mode<synchronous>, transform_indices = @transform_1, window_bounds = array<i64: 1, 16>}, {transform_indices = @transform_2, window_bounds = array<i64: 1, 8, 32>}, {transform_indices = @transform_3, window_bounds = array<i64: 1, 8, 32>}, {transform_indices = @transform_4, window_bounds = array<i64: 1, 1, 1>}]} {
    %c0 = arith.constant 0 : index
    %c0_0 = arith.constant 0 : index
    %c0_1 = arith.constant 0 : index
    %0 = vector.load %arg5[%c0, %c0_0, %c0_1] : memref<1x8x32xf32, #tpu.memory_space<vmem>>, vector<1x8x32xf32>
    %1 = vector.shape_cast %0 : vector<1x8x32xf32> to vector<8x32xf32>
    %c0_2 = arith.constant 0 : index
    %c0_3 = arith.constant 0 : index
    %2 = vector.load %arg8[%c0_2, %c0_3] : memref<16x32xf32, #tpu.memory_space<vmem>>, vector<8x32xf32>
    tpu.vector_store %arg8[%c0_2, %c0_3], %1 {strides = array<i32>} : memref<16x32xf32, #tpu.memory_space<vmem>>, vector<8x32xf32>,
    %c0_4 = arith.constant 0 : index
    %c0_5 = arith.constant 0 : index
    %c0_6 = arith.constant 0 : index
    %3 = vector.load %arg6[%c0_4, %c0_5, %c0_6] : memref<1x8x32xf32, #tpu.memory_space<vmem>>, vector<1x8x32xf32>
    %4 = vector.shape_cast %3 : vector<1x8x32xf32> to vector<8x32xf32>
    %c8 = arith.constant 8 : index
    %c0_7 = arith.constant 0 : index
    %5 = vector.load %arg8[%c8, %c0_7] : memref<16x32xf32, #tpu.memory_space<vmem>>, vector<8x32xf32>
    tpu.vector_store %arg8[%c8, %c0_7], %4 {strides = array<i32>} : memref<16x32xf32, #tpu.memory_space<vmem>>, vector<8x32xf32>,
    %c0_8 = arith.constant 0 : index
    %c0_9 = arith.constant 0 : index
    %6 = vector.load %arg8[%c0_8, %c0_9] : memref<16x32xf32, #tpu.memory_space<vmem>>, vector<16x32xf32>
    %7 = arith.mulf %6, %6 : vector<16x32xf32>
    %cst = arith.constant dense<0.000000e+00> : vector<16xf32>
    %8 = vector.multi_reduction <add>, %7, %cst [1] : vector<16x32xf32> to vector<16xf32>
    %9 = vector.shape_cast %8 : vector<16xf32> to vector<16x1xf32>
    %cst_10 = arith.constant 9.99999996E-13 : f32
    %10 = vector.broadcast %cst_10 : f32 to vector<16x1xf32>
    %11 = arith.addf %9, %10 : vector<16x1xf32>
    %12 = math.rsqrt %11 : vector<16x1xf32>
    %13 = vector.broadcast %12 : vector<16x1xf32> to vector<16x32xf32>
    %14 = arith.mulf %6, %13 : vector<16x32xf32>
    %cst_11 = arith.constant dense<0.000000e+00> : vector<16x16xf32>
    %15 = tpu.matmul %14, %14, %cst_11 {dimension_numbers = #tpu.dot_dimension_numbers<[1], [1], [0], [0], [0, 0, 1, 0], [], []>} : vector<16x32xf32>, vector<16x32xf32>, vector<16x16xf32> -> vector<16x16xf32>
    %c0_12 = arith.constant 0 : index
    %c0_13 = arith.constant 0 : index
    %16 = vector.load %arg3[%c0_12, %c0_13] : memref<16x1xi32, #tpu.memory_space<vmem>>, vector<16x1xi32>
    %c0_14 = arith.constant 0 : index
    %c0_15 = arith.constant 0 : index
    %17 = vector.load %arg4[%c0_14, %c0_15] : memref<1x16xi32, #tpu.memory_space<vmem>>, vector<1x16xi32>
    %18 = vector.broadcast %16 : vector<16x1xi32> to vector<16x16xi32>
    %19 = vector.broadcast %17 : vector<1x16xi32> to vector<16x16xi32>
    %20 = arith.cmpi eq, %18, %19 : vector<16x16xi32>
    %21 = tpu.iota {dimensions = array<i32: 0>} : vector<16x16xi32>
    %22 = tpu.iota {dimensions = array<i32: 1>} : vector<16x16xi32>
    %23 = arith.cmpi eq, %21, %22 : vector<16x16xi32>
    %cst_16 = arith.constant dense<true> : vector<16x16xi1>
    %24 = arith.xori %23, %cst_16 : vector<16x16xi1>
    %25 = arith.andi %20, %24 : vector<16x16xi1>
    %cst_17 = arith.constant dense<true> : vector<16x16xi1>
    %26 = arith.xori %20, %cst_17 : vector<16x16xi1>
    %cst_18 = arith.constant 5.000000e-01 : f32
    %27 = vector.broadcast %cst_18 : f32 to vector<16x16xf32>
    %28 = arith.subf %15, %27 : vector<16x16xf32>
    %cst_19 = arith.constant -2.000000e+00 : f32
    %29 = vector.broadcast %cst_19 : f32 to vector<16x16xf32>
    %30 = arith.mulf %29, %28 : vector<16x16xf32>
    %31 = math.exp %30 : vector<16x16xf32>
    %cst_20 = arith.constant 0.000000e+00 : f32
    %32 = vector.broadcast %cst_20 : f32 to vector<16x16xf32>
    %33 = arith.select %25, %31, %32 : vector<16x16xi1>, vector<16x16xf32>
    %cst_21 = arith.constant dense<0.000000e+00> : vector<16xf32>
    %34 = vector.multi_reduction <add>, %33, %cst_21 [1] : vector<16x16xf32> to vector<16xf32>
    %35 = vector.shape_cast %34 : vector<16xf32> to vector<16x1xf32>
    %cst_22 = arith.constant 5.000000e-01 : f32
    %36 = vector.broadcast %cst_22 : f32 to vector<16x16xf32>
    %37 = arith.subf %15, %36 : vector<16x16xf32>
    %cst_23 = arith.constant 5.000000e+01 : f32
    %38 = vector.broadcast %cst_23 : f32 to vector<16x16xf32>
    %39 = arith.mulf %38, %37 : vector<16x16xf32>
    %40 = math.exp %39 : vector<16x16xf32>
    %cst_24 = arith.constant 0.000000e+00 : f32
    %41 = vector.broadcast %cst_24 : f32 to vector<16x16xf32>
    %42 = arith.select %26, %40, %41 : vector<16x16xi1>, vector<16x16xf32>
    %cst_25 = arith.constant dense<0.000000e+00> : vector<16xf32>
    %43 = vector.multi_reduction <add>, %42, %cst_25 [1] : vector<16x16xf32> to vector<16xf32>
    %44 = vector.shape_cast %43 : vector<16xf32> to vector<16x1xf32>
    %cst_26 = arith.constant 1.000000e+00 : f32
    %45 = vector.broadcast %cst_26 : f32 to vector<16x1xf32>
    %46 = arith.addf %45, %35 : vector<16x1xf32>
    %47 = math.log %46 : vector<16x1xf32>
    %cst_27 = arith.constant 2.000000e+00 : f32
    %48 = vector.broadcast %cst_27 : f32 to vector<16x1xf32>
    %49 = arith.divf %47, %48 : vector<16x1xf32>
    %cst_28 = arith.constant 1.000000e+00 : f32
    %50 = vector.broadcast %cst_28 : f32 to vector<16x1xf32>
    %51 = arith.addf %50, %44 : vector<16x1xf32>
    %52 = math.log %51 : vector<16x1xf32>
    %cst_29 = arith.constant 5.000000e+01 : f32
    %53 = vector.broadcast %cst_29 : f32 to vector<16x1xf32>
    %54 = arith.divf %52, %53 : vector<16x1xf32>
    %55 = arith.addf %49, %54 : vector<16x1xf32>
    %cst_30 = arith.constant dense<0.000000e+00> : vector<1xf32>
    %56 = vector.multi_reduction <add>, %55, %cst_30 [0] : vector<16x1xf32> to vector<1xf32>
    %57 = vector.shape_cast %56 : vector<1xf32> to vector<1x1xf32>
    %cst_31 = arith.constant 1.600000e+01 : f32
    %58 = vector.broadcast %cst_31 : f32 to vector<1x1xf32>
    %59 = arith.divf %57, %58 : vector<1x1xf32>
    %c0_32 = arith.constant 0 : index
    %c0_33 = arith.constant 0 : index
    %c0_34 = arith.constant 0 : index
    %60 = vector.load %arg7[%c0_32, %c0_33, %c0_34] : memref<1x1x1xf32, #tpu.memory_space<vmem>>, vector<1x1x1xf32>
    %61 = vector.shape_cast %60 : vector<1x1x1xf32> to vector<1x1xf32>
    %62 = vector.shape_cast %59 : vector<1x1xf32> to vector<1x1x1xf32>
    tpu.vector_store %arg7[%c0_32, %c0_33, %c0_34], %62 {strides = array<i32>} : memref<1x1x1xf32, #tpu.memory_space<vmem>>, vector<1x1x1xf32>,
    return
  }
  func.func @transform_0(%arg0: i32, %arg1: memref<4xi32, #tpu.memory_space<smem>>, %arg2: memref<4xi32, #tpu.memory_space<smem>>) -> (i32, i32) {
    %c0_i32 = arith.constant 0 : i32
    %c0_i32_0 = arith.constant 0 : i32
    %c0_i32_1 = arith.constant 0 : i32
    return %c0_i32, %c0_i32_0 : i32, i32
  }
  func.func @transform_1(%arg0: i32, %arg1: memref<4xi32, #tpu.memory_space<smem>>, %arg2: memref<4xi32, #tpu.memory_space<smem>>) -> (i32, i32) {
    %c0_i32 = arith.constant 0 : i32
    %c0_i32_0 = arith.constant 0 : i32
    %c0_i32_1 = arith.constant 0 : i32
    return %c0_i32, %c0_i32_0 : i32, i32
  }
  func.func @transform_2(%arg0: i32, %arg1: memref<4xi32, #tpu.memory_space<smem>>, %arg2: memref<4xi32, #tpu.memory_space<smem>>) -> (i32, i32, i32) {
    %0 = arith.index_cast %arg0 : i32 to index
    %1 = memref.load %arg1[%0] : memref<4xi32, #tpu.memory_space<smem>>
    %c0_i32 = arith.constant 0 : i32
    %c0_i32_0 = arith.constant 0 : i32
    %c0_i32_1 = arith.constant 0 : i32
    return %1, %c0_i32, %c0_i32_0 : i32, i32, i32
  }
  func.func @transform_3(%arg0: i32, %arg1: memref<4xi32, #tpu.memory_space<smem>>, %arg2: memref<4xi32, #tpu.memory_space<smem>>) -> (i32, i32, i32) {
    %0 = arith.index_cast %arg0 : i32 to index
    %1 = memref.load %arg2[%0] : memref<4xi32, #tpu.memory_space<smem>>
    %c0_i32 = arith.constant 0 : i32
    %c0_i32_0 = arith.constant 0 : i32
    %c0_i32_1 = arith.constant 0 : i32
    return %1, %c0_i32, %c0_i32_0 : i32, i32, i32
  }
  func.func @transform_4(%arg0: i32, %arg1: memref<4xi32, #tpu.memory_space<smem>>, %arg2: memref<4xi32, #tpu.memory_space<smem>>) -> (i32, i32, i32) {
    %c0_i32 = arith.constant 0 : i32
    %c0_i32_0 = arith.constant 0 : i32
    %c0_i32_1 = arith.constant 0 : i32
    return %arg0, %c0_i32, %c0_i32_0 : i32, i32, i32
  }
}

</mosaic_0001>

<llo_original>
// kernel: graphsage_gebert_forward.3
$region0: #{graphsage_gebert_forward.3}
  #allocation0 [shape = 'u32[]', space=smem, size = 0x4, offset = 0x4, fixed_abs, tag = 'smem constant byte address 0x4 - core index']
  #allocation1 [shape = 'u32[144,128]{1,0:T(1,128)}', space=vmem, size = 0x12000, scoped, tag = 'internal scratch']
  %s0 = inlined_call_operand.vmem [shape: s32[32,1], index: 0, kind: input, shape index: {}]
  %s1 = inlined_call_operand.vmem [shape: f32[32,1], index: 1, kind: input, shape index: {}]
  %s2 = inlined_call_operand.vmem [shape: f32[64,32], index: 2, kind: input, shape index: {}]
  %s3 = inlined_call_operand.vmem [shape: f32[32,32], index: 3, kind: input, shape index: {}]
  %s4 = inlined_call_operand.vmem [shape: f32[1,32], index: 4, kind: input, shape index: {}]
  %s5 = inlined_call_operand.vmem [shape: f32[32,32], index: 5, kind: output, shape index: {}]
  %s6 = sld [smem:[#allocation0]]
  $region30: #{graphsage_gebert_forward.3} parent=0
    _
  %s8 = ssub.s32 1, %s6
  %s9 = scalar_select 0, %s8, %s6
  // Predicated region
  $region2: #{graphsage_gebert_forward.3} parent=0 // pred_check
    _
  $region3: #{graphsage_gebert_forward.3} parent=0 // pred_check_branch
    %11 = sbr.rel (0) target = $region5
  $region4: #{graphsage_gebert_forward.3} parent=0 // pred_region
    _
  $region5: #{graphsage_gebert_forward.3} parent=0 // pred_fallthru
    _
  // Predicated region
  $region6: #{graphsage_gebert_forward.3} parent=0 // pred_check
    _
  $region7: #{graphsage_gebert_forward.3} parent=0 // pred_check_branch
    %13 = sbr.rel (0) target = $region9
  $region8: #{graphsage_gebert_forward.3} parent=0 // pred_region
    _
  $region9: #{graphsage_gebert_forward.3} parent=0 // pred_fallthru
    _
  // Predicated region
  $region10: #{graphsage_gebert_forward.3} parent=0 // pred_check
    _
  $region11: #{graphsage_gebert_forward.3} parent=0 // pred_check_branch
    %15 = sbr.rel (0) target = $region13
  $region12: #{graphsage_gebert_forward.3} parent=0 // pred_region
    _
  $region13: #{graphsage_gebert_forward.3} parent=0 // pred_fallthru
    _
  // Predicated region
  $region14: #{graphsage_gebert_forward.3} parent=0 // pred_check
    _
  $region15: #{graphsage_gebert_forward.3} parent=0 // pred_check_branch
    %17 = sbr.rel (0) target = $region17
  $region16: #{graphsage_gebert_forward.3} parent=0 // pred_region
    _
  $region17: #{graphsage_gebert_forward.3} parent=0 // pred_fallthru
    _
  // Predicated region
  $region18: #{graphsage_gebert_forward.3} parent=0 // pred_check
    _
  $region19: #{graphsage_gebert_forward.3} parent=0 // pred_check_branch
    %19 = sbr.rel (0) target = $region21
  $region20: #{graphsage_gebert_forward.3} parent=0 // pred_region
    _
  $region21: #{graphsage_gebert_forward.3} parent=0 // pred_fallthru
    _
  %v21 = vld [vmem:[%s0] sm:$0xff]
  %v22 = vld [vmem:[%s0 + $0x8] sm:$0xff]
  %v23 = vld [vmem:[%s0 + $0x10] sm:$0xff]
  %v24 = vld [vmem:[%s0 + $0x18] sm:$0xff]
  %v25 = vlaneseq
  %v26 = vand.u32 %v25, 127
  %27 = vset.pattern.permute.xlu0 0
  %28 = vperm.xlu0 %27, %v21
  %v29 = vpop.permute.xlu0 %28
  %30 = vset.pattern.permute.xlu0 0
  %31 = vperm.xlu0 %30, %v22
  %v32 = vpop.permute.xlu0 %31
  %33 = vset.pattern.permute.xlu0 0
  %34 = vperm.xlu0 %33, %v23
  %v35 = vpop.permute.xlu0 %34
  %36 = vset.pattern.permute.xlu0 0
  %37 = vperm.xlu0 %36, %v24
  %v38 = vpop.permute.xlu0 %37
  %vm39 = vcmp.eq.s32.totalorder %v29, %v26
  %vm40 = vcmp.eq.s32.totalorder %v32, %v26
  %vm41 = vcmp.eq.s32.totalorder %v35, %v26
  %vm42 = vcmp.eq.s32.totalorder %v38, %v26
  %v43 = vsel %vm39, 1, 0
  %v44 = vsel %vm40, 1, 0
  %v45 = vsel %vm41, 1, 0
  %v46 = vsel %vm42, 1, 0
  %v47 = vcvt.s32.f32 %v43
  %v48 = vcvt.s32.f32 %v44
  %v49 = vcvt.s32.f32 %v45
  %v50 = vcvt.s32.f32 %v46
  %v51 = vld [vmem:[%s2] sm:$0xff]
  %v52 = vld [vmem:[%s2 + $0x8] sm:$0xff]
  %v53 = vld [vmem:[%s2 + $0x10] sm:$0xff]
  %v54 = vld [vmem:[%s2 + $0x18] sm:$0xff]
  %v55 = vld [vmem:[%s2 + $0x20] sm:$0xff]
  %v56 = vld [vmem:[%s2 + $0x28] sm:$0xff]
  %v57 = vld [vmem:[%s2 + $0x30] sm:$0xff]
  %v58 = vld [vmem:[%s2 + $0x38] sm:$0xff]
  %vm59 = vcmask 523264
  %v61 = vsel %vm59, %v47, 0
  %v64 = vsel %vm59, %v48, 0
  %v67 = vsel %vm59, %v49, 0
  %v70 = vsel %vm59, %v50, 0
  %72 = vmatprep.subr.mxu0 0.0
  %73 = vmatpush1.msra.mxu0 %v51
  %74 = vmatprep.subr.mxu0 0.0
  %75 = vmatpush1.msra.mxu0 %v52
  %76 = vmatprep.subr.mxu0 0.0
  %77 = vmatpush1.msra.mxu0 %v53
  %78 = vmatprep.subr.mxu0 0.0
  %79 = vmatpush1.msra.mxu0 %v54
  %80 = vmatprep.subr.mxu0 0.0
  %81 = vmatpush1.msra.mxu0 %v55
  %82 = vmatprep.subr.mxu0 0.0
  %83 = vmatpush1.msra.mxu0 %v56
  %84 = vmatprep.subr.mxu0 0.0
  %85 = vmatpush1.msra.mxu0 %v57
  %86 = vmatprep.subr.mxu0 0.0
  %87 = vmatpush1.msra.mxu0 %v58
  %88 = vmatprep.subr.mxu0 0.0
  %89 = vmatpush1.msra.mxu0 0.0
  %90 = vmatprep.subr.mxu0 0.0
  %91 = vmatpush1.msra.mxu0 0.0
  %92 = vmatprep.subr.mxu0 0.0
  %93 = vmatpush1.msra.mxu0 0.0
  %94 = vmatprep.subr.mxu0 0.0
  %95 = vmatpush1.msra.mxu0 0.0
  %96 = vmatprep.subr.mxu0 0.0
  %97 = vmatpush1.msra.mxu0 0.0
  %98 = vmatprep.subr.mxu0 0.0
  %99 = vmatpush1.msra.mxu0 0.0
  %100 = vmatprep.subr.mxu0 0.0
  %101 = vmatpush1.msra.mxu0 0.0
  %102 = vmatprep.subr.mxu0 0.0
  %103 = vmatpush1.msra.mxu0 0.0
  %104 = vmatprep.subr.mxu0 0.0
  %105 = vmatpush1.msra.mxu0 0.0
  %106 = vmatprep.subr.mxu0 0.0
  %107 = vmatpush1.msra.mxu0 0.0
  %108 = vmatprep.subr.mxu0 0.0
  %109 = vmatpush1.msra.mxu0 0.0
  %110 = vmatprep.subr.mxu0 0.0
  %111 = vmatpush1.msra.mxu0 0.0
  %112 = vmatprep.subr.mxu0 0.0
  %113 = vmatpush1.msra.mxu0 0.0
  %114 = vmatprep.subr.mxu0 0.0
  %115 = vmatpush1.msra.mxu0 0.0
  %116 = vmatprep.subr.mxu0 0.0
  %117 = vmatpush1.msra.mxu0 0.0
  %118 = vmatprep.subr.mxu0 0.0
  %119 = vmatpush1.msra.mxu0 0.0
  %120 = vmatprep.subr.mxu0 0.0
  %121 = vmatpush1.msra.mxu0 0.0
  %122 = vmatprep.subr.mxu0 0.0
  %123 = vmatpush1.msra.mxu0 0.0
  %124 = vmatprep.subr.mxu0 0.0
  %125 = vmatpush1.msra.mxu0 0.0
  %126 = vmatprep.subr.mxu0 0.0
  %127 = vmatpush1.msra.mxu0 0.0
  %128 = vmatprep.subr.mxu0 0.0
  %129 = vmatpush1.msra.mxu0 0.0
  %130 = vmatprep.subr.mxu0 0.0
  %131 = vmatpush1.msra.mxu0 0.0
  %132 = vmatprep.subr.mxu0 0.0
  %133 = vmatpush1.msra.mxu0 0.0
  %134 = vmatprep.subr.mxu0 0.0
  %135 = vmatpush1.msra.mxu0 0.0
  %136 = vmatprep.mubr.f32.mxu0 0.0
  %137 = vmatmul.mubr.f32.gmra.mrb[0].mxu0 %v61
  %v138 = vpop.f32.mrb[0].mxu0
  %v139 = vadd.f32 0.0, %v138
  %v140 = vpop.f32.mrb[0].mxu0
  %141 = vmatprep.mubr.f32.mxu0 0.0
  %142 = vmatmul.mubr.f32.gmra.mrb[0].mxu0 %v64
  %v143 = vpop.f32.mrb[0].mxu0
  %v144 = vadd.f32 0.0, %v143
  %v145 = vpop.f32.mrb[0].mxu0
  %146 = vmatprep.mubr.f32.mxu0 0.0
  %147 = vmatmul.mubr.f32.gmra.mrb[0].mxu0 %v67
  %v148 = vpop.f32.mrb[0].mxu0
  %v149 = vadd.f32 0.0, %v148
  %v150 = vpop.f32.mrb[0].mxu0
  %151 = vmatprep.mubr.f32.mxu0 0.0
  %152 = vmatmul.mubr.f32.gmra.mrb[0].mxu0 %v70
  %v153 = vpop.f32.mrb[0].mxu0
  %v154 = vadd.f32 0.0, %v153
  %v155 = vpop.f32.mrb[0].mxu0
  %156 = vdwg.mxu0
  %v157 = vld [vmem:[%s1] sm:$0xff]
  %v158 = vld [vmem:[%s1 + $0x8] sm:$0xff]
  %v159 = vld [vmem:[%s1 + $0x10] sm:$0xff]
  %v160 = vld [vmem:[%s1 + $0x18] sm:$0xff]
  %162 = vset.pattern.permute.xlu0 0
  %163 = vperm.xlu0 %162, %v157
  %v164 = vpop.permute.xlu0 %163
  %167 = vset.pattern.permute.xlu0 0
  %168 = vperm.xlu0 %167, %v158
  %v169 = vpop.permute.xlu0 %168
  %172 = vset.pattern.permute.xlu0 0
  %173 = vperm.xlu0 %172, %v159
  %v174 = vpop.permute.xlu0 %173
  %177 = vset.pattern.permute.xlu0 0
  %178 = vperm.xlu0 %177, %v160
  %v179 = vpop.permute.xlu0 %178
  %v181 = vmul.f32 %v139, %v164
  %v182 = vmul.f32 %v144, %v169
  %v183 = vmul.f32 %v149, %v174
  %v184 = vmul.f32 %v154, %v179
  %v185 = vpack.c.bf16 %v182, %v181
  %v186 = vpack.c.bf16 %v184, %v183
  %v187 = vld [vmem:[%s3] sm:$0xff]
  %v188 = vld [vmem:[%s3 + $0x8] sm:$0xff]
  %v189 = vld [vmem:[%s3 + $0x10] sm:$0xff]
  %v190 = vld [vmem:[%s3 + $0x18] sm:$0xff]
  %v191 = vpack.c.bf16 %v188, %v187
  %v192 = vpack.c.bf16 %v190, %v189
  %v193 = vld [vmem:[%s4] sm:$0x1]
  %v195 = vlaneseq
  %v196 = vshrl.u32 %v195, 7
  %v197 = vsub.s32 0, %v196
  %v198 = vrot.slane %v193, %v197
  %vm200 = vcmask 261120
  %v202 = vsel %vm200, %v185, 0
  %v205 = vsel %vm200, %v186, 0
  %207 = vmatprep.subr.bf16.mxu0 0
  %208 = vmatpush1.bf16.msra.mxu0 %v191
  %209 = vmatprep.subr.bf16.mxu0 0
  %210 = vmatpush1.bf16.msra.mxu0 %v192
  %211 = vmatprep.subr.bf16.mxu0 0
  %212 = vmatpush1.bf16.msra.mxu0 0
  %213 = vmatprep.subr.bf16.mxu0 0
  %214 = vmatpush1.bf16.msra.mxu0 0
  %215 = vmatprep.subr.bf16.mxu0 0
  %216 = vmatpush1.bf16.msra.mxu0 0
  %217 = vmatprep.subr.bf16.mxu0 0
  %218 = vmatpush1.bf16.msra.mxu0 0
  %219 = vmatprep.subr.bf16.mxu0 0
  %220 = vmatpush1.bf16.msra.mxu0 0
  %221 = vmatprep.subr.bf16.mxu0 0
  %222 = vmatpush1.bf16.msra.mxu0 0
  %223 = vmatprep.subr.bf16.mxu0 0
  %224 = vmatpush1.bf16.msra.mxu0 0
  %225 = vmatprep.subr.bf16.mxu0 0
  %226 = vmatpush1.bf16.msra.mxu0 0
  %227 = vmatprep.subr.bf16.mxu0 0
  %228 = vmatpush1.bf16.msra.mxu0 0
  %229 = vmatprep.subr.bf16.mxu0 0
  %230 = vmatpush1.bf16.msra.mxu0 0
  %231 = vmatprep.subr.bf16.mxu0 0
  %232 = vmatpush1.bf16.msra.mxu0 0
  %233 = vmatprep.subr.bf16.mxu0 0
  %234 = vmatpush1.bf16.msra.mxu0 0
  %235 = vmatprep.subr.bf16.mxu0 0
  %236 = vmatpush1.bf16.msra.mxu0 0
  %237 = vmatprep.subr.bf16.mxu0 0
  %238 = vmatpush1.bf16.msra.mxu0 0
  %239 = vmatprep.mubr.bf16.mxu0 0
  %240 = vmatmul.mubr.bf16.gmra.mrb[0].mxu0 %v202
  %v241 = vpop.f32.mrb[0].mxu0
  %v242 = vadd.f32 %v198, %v241
  %v243 = vpop.f32.mrb[0].mxu0
  %v244 = vpop.f32.mrb[0].mxu0
  %v245 = vadd.f32 %v198, %v244
  %v246 = vpop.f32.mrb[0].mxu0
  %247 = vmatprep.mubr.bf16.mxu0 0
  %248 = vmatmul.mubr.bf16.gmra.mrb[0].mxu0 %v205
  %v249 = vpop.f32.mrb[0].mxu0
  %v250 = vadd.f32 %v198, %v249
  %v251 = vpop.f32.mrb[0].mxu0
  %v252 = vpop.f32.mrb[0].mxu0
  %v253 = vadd.f32 %v198, %v252
  %v254 = vpop.f32.mrb[0].mxu0
  %255 = vdwg.mxu0
  %v256 = vmax.f32 %v242, 0.0
  %v257 = vmax.f32 %v245, 0.0
  %v258 = vmax.f32 %v250, 0.0
  %v259 = vmax.f32 %v253, 0.0
  %260 = vst.msk [vmem:[%s5] sm:$0xff] %vm200, %v256
  %261 = vst.msk [vmem:[%s5 + $0x8] sm:$0xff] %vm200, %v257
  %262 = vst.msk [vmem:[%s5 + $0x10] sm:$0xff] %vm200, %v258
  %263 = vst.msk [vmem:[%s5 + $0x18] sm:$0xff] %vm200, %v259
  // Predicated region
  $region22: #{graphsage_gebert_forward.3} parent=0 // pred_check
    _
  $region23: #{graphsage_gebert_forward.3} parent=0 // pred_check_branch
    %265 = sbr.rel (0) target = $region25
  $region24: #{graphsage_gebert_forward.3} parent=0 // pred_region
    _
  $region25: #{graphsage_gebert_forward.3} parent=0 // pred_fallthru
    _
  // Predicated region
  $region26: #{graphsage_gebert_forward.3} parent=0 // pred_check
    _
  $region27: #{graphsage_gebert_forward.3} parent=0 // pred_check_branch
    %267 = sbr.rel (0) target = $region29
  $region28: #{graphsage_gebert_forward.3} parent=0 // pred_region
    _
  $region29: #{graphsage_gebert_forward.3} parent=0 // pred_fallthru
    _

// kernel: graphsage_gebert_forward.4
$region0: #{graphsage_gebert_forward.4}
  #allocation0 [shape = 'u32[]', space=smem, size = 0x4, offset = 0x4, fixed_abs, tag = 'smem constant byte address 0x4 - core index']
  #allocation1 [shape = 'u32[144,128]{1,0:T(1,128)}', space=vmem, size = 0x12000, scoped, tag = 'internal scratch']
  %s0 = inlined_call_operand.vmem [shape: f32[2,16,32], index: 0, kind: input, shape index: {}]
  %s1 = inlined_call_operand.vmem [shape: f32[16,16], index: 1, kind: input, shape index: {}]
  %s2 = inlined_call_operand.vmem [shape: f32[2,32,32], index: 2, kind: input, shape index: {}]
  %s3 = inlined_call_operand.vmem [shape: f32[2,32,32], index: 3, kind: input, shape index: {}]
  %s4 = inlined_call_operand.vmem [shape: f32[2,1,32], index: 4, kind: input, shape index: {}]
  %s5 = inlined_call_operand.vmem [shape: f32[2,16,32], index: 5, kind: output, shape index: {}]
  %s6 = sld [smem:[#allocation0]]
  $region53: #{graphsage_gebert_forward.4} parent=0
    _
  %s8 = ssub.s32 1, %s6
  %s9 = scalar_select 0, %s8, %s6
  loop: start=0, step=1, limit=4
  $region2: #{graphsage_gebert_forward.4} parent=0 // loop_pre_header
    _
  $region3: #{graphsage_gebert_forward.4} parent=0 // loop_header
    %s11 = sphi 0, %s15
    %p12 = scmp.ge.s32.totalorder %s11, 4
    %s21 = sphi 0, %s23
    %s24 = sphi 0, %s21
    %s25 = sphi 0, %s24
    %s41 = sphi 0, %s25
    %s45 = sphi 0, %s45
    %s47 = sphi 0, %s45
    %s48 = sphi 0, %s47
    %s62 = sphi 0, %s48
    %s66 = sphi 0, %s66
    %s68 = sphi 0, %s66
    %s69 = sphi 0, %s68
    %s83 = sphi 0, %s69
    %s87 = sphi 0, %s87
    %s89 = sphi 0, %s87
    %s90 = sphi 0, %s89
    %s104 = sphi 0, %s90
    %s108 = sphi 0, %s108
    %s110 = sphi 0, %s108
    %s111 = sphi 0, %s110
    %s125 = sphi 0, %s111
    %s131 = sphi 0, %s133
    %s134 = sphi 0, %s131
    %s135 = sphi 0, %s134
    %s151 = sphi 0, %s135
  $region4: #{graphsage_gebert_forward.4} parent=0 // loop_header_branch
    %14 = sbr.rel (%p12) target = $region8
  $region5: #{graphsage_gebert_forward.4} parent=0 // loop_body
    %s16 = ssub.s32 %s11, 1
    %s17 = ssub.s32 %s11, 2
    %s18 = sadd.s32 %s11, 1
    %s19 = ssub.s32 %s11, %s18
    %p20 = scmp.eq.s32.totalorder %s19, 0
    %s22 = sadd.s32 %s21, 1
    %s23 = scalar_select %p20, %s21, %s22
    %p26 = pneg %p20
    %p27 = scmp.eq.s32.totalorder %s11, 1
    %p28 = por %p26, %p27
    %p29 = scmp.ne.s32.totalorder %s21, %s24
    %p30 = scmp.eq.s32.totalorder %s11, 0
    %p31 = por %p29, %p30
    %p32 = scmp.ne.s32.totalorder %s21, %s24
    %p33 = scmp.eq.s32.totalorder %s16, 1
    %p34 = por %p32, %p33
    %p35 = scmp.ne.s32.totalorder %s24, %s25
    %p36 = scmp.eq.s32.totalorder %s16, 0
    %p37 = por %p35, %p36
    %p38 = scmp.ne.s32.totalorder %s24, %s25
    %p39 = scmp.eq.s32.totalorder %s17, 1
    %p40 = por %p38, %p39
    %p42 = scmp.ne.s32.totalorder %s25, %s41
    %p43 = scmp.eq.s32.totalorder %s17, 0
    %p44 = por %p42, %p43
    %s46 = sadd.s32 %s45, 1
    %p49 = scmp.eq.s32.totalorder %s11, 1
    %p50 = scmp.ne.s32.totalorder %s45, %s47
    %p51 = scmp.eq.s32.totalorder %s11, 0
    %p52 = por %p50, %p51
    %p53 = scmp.ne.s32.totalorder %s45, %s47
    %p54 = scmp.eq.s32.totalorder %s16, 1
    %p55 = por %p53, %p54
    %p56 = scmp.ne.s32.totalorder %s47, %s48
    %p57 = scmp.eq.s32.totalorder %s16, 0
    %p58 = por %p56, %p57
    %p59 = scmp.ne.s32.totalorder %s47, %s48
    %p60 = scmp.eq.s32.totalorder %s17, 1
    %p61 = por %p59, %p60
    %p63 = scmp.ne.s32.totalorder %s48, %s62
    %p64 = scmp.eq.s32.totalorder %s17, 0
    %p65 = por %p63, %p64
    %s67 = sadd.s32 %s66, 1
    %p70 = scmp.eq.s32.totalorder %s11, 1
    %p71 = scmp.ne.s32.totalorder %s66, %s68
    %p72 = scmp.eq.s32.totalorder %s11, 0
    %p73 = por %p71, %p72
    %p74 = scmp.ne.s32.totalorder %s66, %s68
    %p75 = scmp.eq.s32.totalorder %s16, 1
    %p76 = por %p74, %p75
    %p77 = scmp.ne.s32.totalorder %s68, %s69
    %p78 = scmp.eq.s32.totalorder %s16, 0
    %p79 = por %p77, %p78
    %p80 = scmp.ne.s32.totalorder %s68, %s69
    %p81 = scmp.eq.s32.totalorder %s17, 1
    %p82 = por %p80, %p81
    %p84 = scmp.ne.s32.totalorder %s69, %s83
    %p85 = scmp.eq.s32.totalorder %s17, 0
    %p86 = por %p84, %p85
    %s88 = sadd.s32 %s87, 1
    %p91 = scmp.eq.s32.totalorder %s11, 1
    %p92 = scmp.ne.s32.totalorder %s87, %s89
    %p93 = scmp.eq.s32.totalorder %s11, 0
    %p94 = por %p92, %p93
    %p95 = scmp.ne.s32.totalorder %s87, %s89
    %p96 = scmp.eq.s32.totalorder %s16, 1
    %p97 = por %p95, %p96
    %p98 = scmp.ne.s32.totalorder %s89, %s90
    %p99 = scmp.eq.s32.totalorder %s16, 0
    %p100 = por %p98, %p99
    %p101 = scmp.ne.s32.totalorder %s89, %s90
    %p102 = scmp.eq.s32.totalorder %s17, 1
    %p103 = por %p101, %p102
    %p105 = scmp.ne.s32.totalorder %s90, %s104
    %p106 = scmp.eq.s32.totalorder %s17, 0
    %p107 = por %p105, %p106
    %s109 = sadd.s32 %s108, 1
    %p112 = scmp.eq.s32.totalorder %s11, 1
    %p113 = scmp.ne.s32.totalorder %s108, %s110
    %p114 = scmp.eq.s32.totalorder %s11, 0
    %p115 = por %p113, %p114
    %p116 = scmp.ne.s32.totalorder %s108, %s110
    %p117 = scmp.eq.s32.totalorder %s16, 1
    %p118 = por %p116, %p117
    %p119 = scmp.ne.s32.totalorder %s110, %s111
    %p120 = scmp.eq.s32.totalorder %s16, 0
    %p121 = por %p119, %p120
    %p122 = scmp.ne.s32.totalorder %s110, %s111
    %p123 = scmp.eq.s32.totalorder %s17, 1
    %p124 = por %p122, %p123
    %p126 = scmp.ne.s32.totalorder %s111, %s125
    %p127 = scmp.eq.s32.totalorder %s17, 0
    %p128 = por %p126, %p127
    %s129 = ssub.s32 %s11, %s18
    %p130 = scmp.eq.s32.totalorder %s129, 0
    %s132 = sadd.s32 %s131, 1
    %s133 = scalar_select %p130, %s131, %s132
    %p136 = pneg %p130
    %p137 = scmp.eq.s32.totalorder %s11, 1
    %p138 = por %p136, %p137
    %p139 = scmp.ne.s32.totalorder %s131, %s134
    %p140 = scmp.eq.s32.totalorder %s11, 0
    %p141 = por %p139, %p140
    %p142 = scmp.ne.s32.totalorder %s131, %s134
    %p143 = scmp.eq.s32.totalorder %s16, 1
    %p144 = por %p142, %p143
    %p145 = scmp.ne.s32.totalorder %s134, %s135
    %p146 = scmp.eq.s32.totalorder %s16, 0
    %p147 = por %p145, %p146
    %p148 = scmp.ne.s32.totalorder %s134, %s135
    %p149 = scmp.eq.s32.totalorder %s17, 1
    %p150 = por %p148, %p149
    %p152 = scmp.ne.s32.totalorder %s135, %s151
    %p153 = scmp.eq.s32.totalorder %s17, 0
    %p154 = por %p152, %p153
    %p155 = scmp.le.s32.totalorder 1, %s11
    %p156 = scmp.lt.s32.totalorder %s11, 3
    %p157 = pnand %p155, %p156
    %p158 = pneg %p157
    // Predicated region
    $region9: #{graphsage_gebert_forward.4} parent=5 // pred_check
      _
    $region10: #{graphsage_gebert_forward.4} parent=5 // pred_check_branch
      %160 = sbr.rel (%p157) target = $region12
    $region11: #{graphsage_gebert_forward.4} parent=5 // pred_region
      %s161 = ssub.s32 %s11, 1
      // Predicated region
      $region13: #{graphsage_gebert_forward.4} parent=11 // pred_check
        %p162 = pneg %p58
      $region14: #{graphsage_gebert_forward.4} parent=11 // pred_check_branch
        %164 = sbr.rel (%p162) target = $region16
      $region15: #{graphsage_gebert_forward.4} parent=11 // pred_region
        _
      $region16: #{graphsage_gebert_forward.4} parent=11 // pred_fallthru
        _
      // Predicated region
      $region17: #{graphsage_gebert_forward.4} parent=11 // pred_check
        %p165 = pneg %p79
      $region18: #{graphsage_gebert_forward.4} parent=11 // pred_check_branch
        %167 = sbr.rel (%p165) target = $region20
      $region19: #{graphsage_gebert_forward.4} parent=11 // pred_region
        _
      $region20: #{graphsage_gebert_forward.4} parent=11 // pred_fallthru
        _
      // Predicated region
      $region21: #{graphsage_gebert_forward.4} parent=11 // pred_check
        %p168 = pneg %p100
      $region22: #{graphsage_gebert_forward.4} parent=11 // pred_check_branch
        %170 = sbr.rel (%p168) target = $region24
      $region23: #{graphsage_gebert_forward.4} parent=11 // pred_region
        _
      $region24: #{graphsage_gebert_forward.4} parent=11 // pred_fallthru
        _
      // Predicated region
      $region25: #{graphsage_gebert_forward.4} parent=11 // pred_check
        %p171 = pneg %p121
      $region26: #{graphsage_gebert_forward.4} parent=11 // pred_check_branch
        %173 = sbr.rel (%p171) target = $region28
      $region27: #{graphsage_gebert_forward.4} parent=11 // pred_region
        _
      $region28: #{graphsage_gebert_forward.4} parent=11 // pred_fallthru
        _
    $region12: #{graphsage_gebert_forward.4} parent=5 // pred_fallthru
      _
    %p174 = scmp.lt.s32.totalorder %s11, 2
    // Predicated region
    $region29: #{graphsage_gebert_forward.4} parent=5 // pred_check
      %p175 = pneg %p174
    $region30: #{graphsage_gebert_forward.4} parent=5 // pred_check_branch
      %177 = sbr.rel (%p175) target = $region32
    $region31: #{graphsage_gebert_forward.4} parent=5 // pred_region
      // Predicated region
      $region33: #{graphsage_gebert_forward.4} parent=31 // pred_check
        %p178 = pneg %p31
      $region34: #{graphsage_gebert_forward.4} parent=31 // pred_check_branch
        %180 = sbr.rel (%p178) target = $region36
      $region35: #{graphsage_gebert_forward.4} parent=31 // pred_region
        %p181 = scmp.lt.s32.totalorder %s11, 1
        %s182 = scalar_select %p181, %s11, 1
        %s183 = smul.addr %s182, 2
        %s184 = smul.addr %s183, 8
        %s185 = scalar_lea.vmem %s0, %s184
      $region36: #{graphsage_gebert_forward.4} parent=31 // pred_fallthru
        _
    $region32: #{graphsage_gebert_forward.4} parent=5 // pred_fallthru
      _
    %p186 = scmp.le.s32.totalorder 1, %s11
    %p187 = scmp.lt.s32.totalorder %s11, 3
    %p188 = pnand %p186, %p187
    %p189 = pneg %p188
    // Predicated region
    $region37: #{graphsage_gebert_forward.4} parent=5 // pred_check
      _
    $region38: #{graphsage_gebert_forward.4} parent=5 // pred_check_branch
      %191 = sbr.rel (%p188) target = $region40
    $region39: #{graphsage_gebert_forward.4} parent=5 // pred_region
      %s192 = ssub.s32 %s11, 1
      %p193 = scmp.lt.s32.totalorder %s16, 1
      %s194 = scalar_select %p193, %s16, 1
      %s195 = smul.addr %s194, 2
      %s196 = smul.addr %s195, 8
      %s197 = scalar_lea.vmem %s0, %s196
      %p198 = pneg %p37
      %p199 = pneg %p34
      %p200 = pneg %p58
      %p201 = pneg %p55
      %p202 = pneg %p79
      %p203 = pneg %p76
      %p204 = pneg %p100
      %p205 = pneg %p97
      %p206 = pneg %p121
      %p207 = pneg %p118
      %p208 = pneg %p147
      %p209 = pneg %p144
      %p210 = scmp.lt.s32.totalorder %s16, 1
      %s211 = scalar_select %p210, %s16, 1
      %s212 = smul.addr %s211, 2
      %s213 = smul.addr %s212, 8
      %s214 = scalar_lea.vmem %s5, %s213
      %p215 = scmp.lt.s32.totalorder %s16, 1
      %s216 = scalar_select %p215, %s16, 1
      %s217 = smul.addr %s216, 2
      %s218 = smul.addr %s217, 8
      %s219 = scalar_lea.vmem %s0, %s218
      %p220 = scmp.lt.s32.totalorder %s16, 1
      %s221 = scalar_select %p220, %s16, 1
      %s222 = smul.addr %s221, 2
      %s223 = smul.addr %s222, 8
      %s224 = scalar_lea.vmem %s5, %s223
      %v226 = vld [vmem:[%s219] sm:$0xff]
      %v227 = vld [vmem:[%s219 + $0x8] sm:$0xff]
      %v228 = vld [vmem:[%s1] sm:$0xff]
      %v229 = vld [vmem:[%s1 + $0x8] sm:$0xff]
      %vm230 = vcmask 130048
      %v232 = vsel %vm230, %v228, 0
      %v235 = vsel %vm230, %v229, 0
      %237 = vmatprep.subr.mxu0 0.0
      %238 = vmatpush1.msra.mxu0 %v226
      %239 = vmatprep.subr.mxu0 0.0
      %240 = vmatpush1.msra.mxu0 %v227
      %241 = vmatprep.subr.mxu0 0.0
      %242 = vmatpush1.msra.mxu0 0.0
      %243 = vmatprep.subr.mxu0 0.0
      %244 = vmatpush1.msra.mxu0 0.0
      %245 = vmatprep.subr.mxu0 0.0
      %246 = vmatpush1.msra.mxu0 0.0
      %247 = vmatprep.subr.mxu0 0.0
      %248 = vmatpush1.msra.mxu0 0.0
      %249 = vmatprep.subr.mxu0 0.0
      %250 = vmatpush1.msra.mxu0 0.0
      %251 = vmatprep.subr.mxu0 0.0
      %252 = vmatpush1.msra.mxu0 0.0
      %253 = vmatprep.subr.mxu0 0.0
      %254 = vmatpush1.msra.mxu0 0.0
      %255 = vmatprep.subr.mxu0 0.0
      %256 = vmatpush1.msra.mxu0 0.0
      %257 = vmatprep.subr.mxu0 0.0
      %258 = vmatpush1.msra.mxu0 0.0
      %259 = vmatprep.subr.mxu0 0.0
      %260 = vmatpush1.msra.mxu0 0.0
      %261 = vmatprep.subr.mxu0 0.0
      %262 = vmatpush1.msra.mxu0 0.0
      %263 = vmatprep.subr.mxu0 0.0
      %264 = vmatpush1.msra.mxu0 0.0
      %265 = vmatprep.subr.mxu0 0.0
      %266 = vmatpush1.msra.mxu0 0.0
      %267 = vmatprep.subr.mxu0 0.0
      %268 = vmatpush1.msra.mxu0 0.0
      %269 = vmatprep.subr.mxu0 0.0
      %270 = vmatpush1.msra.mxu0 0.0
      %271 = vmatprep.subr.mxu0 0.0
      %272 = vmatpush1.msra.mxu0 0.0
      %273 = vmatprep.subr.mxu0 0.0
      %274 = vmatpush1.msra.mxu0 0.0
      %275 = vmatprep.subr.mxu0 0.0
      %276 = vmatpush1.msra.mxu0 0.0
      %277 = vmatprep.subr.mxu0 0.0
      %278 = vmatpush1.msra.mxu0 0.0
      %279 = vmatprep.subr.mxu0 0.0
      %280 = vmatpush1.msra.mxu0 0.0
      %281 = vmatprep.subr.mxu0 0.0
      %282 = vmatpush1.msra.mxu0 0.0
      %283 = vmatprep.subr.mxu0 0.0
      %284 = vmatpush1.msra.mxu0 0.0
      %285 = vmatprep.subr.mxu0 0.0
      %286 = vmatpush1.msra.mxu0 0.0
      %287 = vmatprep.subr.mxu0 0.0
      %288 = vmatpush1.msra.mxu0 0.0
      %289 = vmatprep.subr.mxu0 0.0
      %290 = vmatpush1.msra.mxu0 0.0
      %291 = vmatprep.subr.mxu0 0.0
      %292 = vmatpush1.msra.mxu0 0.0
      %293 = vmatprep.subr.mxu0 0.0
      %294 = vmatpush1.msra.mxu0 0.0
      %295 = vmatprep.subr.mxu0 0.0
      %296 = vmatpush1.msra.mxu0 0.0
      %297 = vmatprep.subr.mxu0 0.0
      %298 = vmatpush1.msra.mxu0 0.0
      %299 = vmatprep.subr.mxu0 0.0
      %300 = vmatpush1.msra.mxu0 0.0
      %301 = vmatprep.mubr.f32.mxu0 0.0
      %302 = vmatmul.mubr.f32.gmra.mrb[0].mxu0 %v232
      %v303 = vpop.f32.mrb[0].mxu0
      %v304 = vadd.f32 0.0, %v303
      %v305 = vpop.f32.mrb[0].mxu0
      %306 = vmatprep.mubr.f32.mxu0 0.0
      %307 = vmatmul.mubr.f32.gmra.mrb[0].mxu0 %v235
      %v308 = vpop.f32.mrb[0].mxu0
      %v309 = vadd.f32 0.0, %v308
      %v310 = vpop.f32.mrb[0].mxu0
      %311 = vdwg.mxu0
      %v312 = vpack.c.bf16 %v227, %v226
      %v313 = vld [vmem:[%s2] sm:$0xff]
      %v314 = vld [vmem:[%s2 + $0x8] sm:$0xff]
      %v315 = vld [vmem:[%s2 + $0x10] sm:$0xff]
      %v316 = vld [vmem:[%s2 + $0x18] sm:$0xff]
      %v317 = vpack.c.bf16 %v314, %v313
      %v318 = vpack.c.bf16 %v316, %v315
      %v319 = vpack.c.bf16 %v309, %v304
      %v320 = vld [vmem:[%s3] sm:$0xff]
      %v321 = vld [vmem:[%s3 + $0x8] sm:$0xff]
      %v322 = vld [vmem:[%s3 + $0x10] sm:$0xff]
      %v323 = vld [vmem:[%s3 + $0x18] sm:$0xff]
      %v324 = vpack.c.bf16 %v321, %v320
      %v325 = vpack.c.bf16 %v323, %v322
      %vm326 = vcmask 261120
      %v328 = vsel %vm326, %v319, 0
      %330 = vmatprep.subr.bf16.mxu0 0
      %331 = vmatpush1.bf16.msra.mxu0 %v324
      %332 = vmatprep.subr.bf16.mxu0 0
      %333 = vmatpush1.bf16.msra.mxu0 %v325
      %334 = vmatprep.subr.bf16.mxu0 0
      %335 = vmatpush1.bf16.msra.mxu0 0
      %336 = vmatprep.subr.bf16.mxu0 0
      %337 = vmatpush1.bf16.msra.mxu0 0
      %338 = vmatprep.subr.bf16.mxu0 0
      %339 = vmatpush1.bf16.msra.mxu0 0
      %340 = vmatprep.subr.bf16.mxu0 0
      %341 = vmatpush1.bf16.msra.mxu0 0
      %342 = vmatprep.subr.bf16.mxu0 0
      %343 = vmatpush1.bf16.msra.mxu0 0
      %344 = vmatprep.subr.bf16.mxu0 0
      %345 = vmatpush1.bf16.msra.mxu0 0
      %346 = vmatprep.subr.bf16.mxu0 0
      %347 = vmatpush1.bf16.msra.mxu0 0
      %348 = vmatprep.subr.bf16.mxu0 0
      %349 = vmatpush1.bf16.msra.mxu0 0
      %350 = vmatprep.subr.bf16.mxu0 0
      %351 = vmatpush1.bf16.msra.mxu0 0
      %352 = vmatprep.subr.bf16.mxu0 0
      %353 = vmatpush1.bf16.msra.mxu0 0
      %354 = vmatprep.subr.bf16.mxu0 0
      %355 = vmatpush1.bf16.msra.mxu0 0
      %356 = vmatprep.subr.bf16.mxu0 0
      %357 = vmatpush1.bf16.msra.mxu0 0
      %358 = vmatprep.subr.bf16.mxu0 0
      %359 = vmatpush1.bf16.msra.mxu0 0
      %360 = vmatprep.subr.bf16.mxu0 0
      %361 = vmatpush1.bf16.msra.mxu0 0
      %362 = vmatprep.mubr.bf16.mxu0 0
      %363 = vmatmul.mubr.bf16.gmra.mrb[0].mxu0 %v328
      %v364 = vpop.f32.mrb[0].mxu0
      %v365 = vadd.f32 0.0, %v364
      %v366 = vpop.f32.mrb[0].mxu0
      %v367 = vpop.f32.mrb[0].mxu0
      %v368 = vadd.f32 0.0, %v367
      %v369 = vpop.f32.mrb[0].mxu0
      %370 = vdwg.mxu0
      %v372 = vsel %vm326, %v312, 0
      %374 = vmatprep.subr.bf16.mxu0 0
      %375 = vmatpush1.bf16.msra.mxu0 %v317
      %376 = vmatprep.subr.bf16.mxu0 0
      %377 = vmatpush1.bf16.msra.mxu0 %v318
      %378 = vmatprep.subr.bf16.mxu0 0
      %379 = vmatpush1.bf16.msra.mxu0 0
      %380 = vmatprep.subr.bf16.mxu0 0
      %381 = vmatpush1.bf16.msra.mxu0 0
      %382 = vmatprep.subr.bf16.mxu0 0
      %383 = vmatpush1.bf16.msra.mxu0 0
      %384 = vmatprep.subr.bf16.mxu0 0
      %385 = vmatpush1.bf16.msra.mxu0 0
      %386 = vmatprep.subr.bf16.mxu0 0
      %387 = vmatpush1.bf16.msra.mxu0 0
      %388 = vmatprep.subr.bf16.mxu0 0
      %389 = vmatpush1.bf16.msra.mxu0 0
      %390 = vmatprep.subr.bf16.mxu0 0
      %391 = vmatpush1.bf16.msra.mxu0 0
      %392 = vmatprep.subr.bf16.mxu0 0
      %393 = vmatpush1.bf16.msra.mxu0 0
      %394 = vmatprep.subr.bf16.mxu0 0
      %395 = vmatpush1.bf16.msra.mxu0 0
      %396 = vmatprep.subr.bf16.mxu0 0
      %397 = vmatpush1.bf16.msra.mxu0 0
      %398 = vmatprep.subr.bf16.mxu0 0
      %399 = vmatpush1.bf16.msra.mxu0 0
      %400 = vmatprep.subr.bf16.mxu0 0
      %401 = vmatpush1.bf16.msra.mxu0 0
      %402 = vmatprep.subr.bf16.mxu0 0
      %403 = vmatpush1.bf16.msra.mxu0 0
      %404 = vmatprep.subr.bf16.mxu0 0
      %405 = vmatpush1.bf16.msra.mxu0 0
      %406 = vmatprep.mubr.bf16.mxu0 0
      %407 = vmatmul.mubr.bf16.gmra.mrb[0].mxu0 %v372
      %v408 = vpop.f32.mrb[0].mxu0
      %v409 = vadd.f32 %v365, %v408
      %v410 = vpop.f32.mrb[0].mxu0
      %v411 = vpop.f32.mrb[0].mxu0
      %v412 = vadd.f32 %v368, %v411
      %v413 = vpop.f32.mrb[0].mxu0
      %414 = vdwg.mxu0
      %v415 = vld [vmem:[%s4] sm:$0x1]
      %v417 = vlaneseq
      %v418 = vshrl.u32 %v417, 7
      %v419 = vsub.s32 0, %v418
      %v420 = vrot.slane %v415, %v419
      %v422 = vadd.f32 %v409, %v420
      %v423 = vadd.f32 %v412, %v420
      %v424 = vmax.f32 %v422, 0.0
      %v425 = vmax.f32 %v423, 0.0
      %426 = vmatprep.subr.mxu0 0.0
      %427 = vmatpush1.msra.mxu0 %v424
      %428 = vmatprep.subr.mxu0 0.0
      %429 = vmatpush1.msra.mxu0 %v425
      %430 = vmatprep.subr.mxu0 0.0
      %431 = vmatpush1.msra.mxu0 0.0
      %432 = vmatprep.subr.mxu0 0.0
      %433 = vmatpush1.msra.mxu0 0.0
      %434 = vmatprep.subr.mxu0 0.0
      %435 = vmatpush1.msra.mxu0 0.0
      %436 = vmatprep.subr.mxu0 0.0
      %437 = vmatpush1.msra.mxu0 0.0
      %438 = vmatprep.subr.mxu0 0.0
      %439 = vmatpush1.msra.mxu0 0.0
      %440 = vmatprep.subr.mxu0 0.0
      %441 = vmatpush1.msra.mxu0 0.0
      %442 = vmatprep.subr.mxu0 0.0
      %443 = vmatpush1.msra.mxu0 0.0
      %444 = vmatprep.subr.mxu0 0.0
      %445 = vmatpush1.msra.mxu0 0.0
      %446 = vmatprep.subr.mxu0 0.0
      %447 = vmatpush1.msra.mxu0 0.0
      %448 = vmatprep.subr.mxu0 0.0
      %449 = vmatpush1.msra.mxu0 0.0
      %450 = vmatprep.subr.mxu0 0.0
      %451 = vmatpush1.msra.mxu0 0.0
      %452 = vmatprep.subr.mxu0 0.0
      %453 = vmatpush1.msra.mxu0 0.0
      %454 = vmatprep.subr.mxu0 0.0
      %455 = vmatpush1.msra.mxu0 0.0
      %456 = vmatprep.subr.mxu0 0.0
      %457 = vmatpush1.msra.mxu0 0.0
      %458 = vmatprep.subr.mxu0 0.0
      %459 = vmatpush1.msra.mxu0 0.0
      %460 = vmatprep.subr.mxu0 0.0
      %461 = vmatpush1.msra.mxu0 0.0
      %462 = vmatprep.subr.mxu0 0.0
      %463 = vmatpush1.msra.mxu0 0.0
      %464 = vmatprep.subr.mxu0 0.0
      %465 = vmatpush1.msra.mxu0 0.0
      %466 = vmatprep.subr.mxu0 0.0
      %467 = vmatpush1.msra.mxu0 0.0
      %468 = vmatprep.subr.mxu0 0.0
      %469 = vmatpush1.msra.mxu0 0.0
      %470 = vmatprep.subr.mxu0 0.0
      %471 = vmatpush1.msra.mxu0 0.0
      %472 = vmatprep.subr.mxu0 0.0
      %473 = vmatpush1.msra.mxu0 0.0
      %474 = vmatprep.subr.mxu0 0.0
      %475 = vmatpush1.msra.mxu0 0.0
      %476 = vmatprep.subr.mxu0 0.0
      %477 = vmatpush1.msra.mxu0 0.0
      %478 = vmatprep.subr.mxu0 0.0
      %479 = vmatpush1.msra.mxu0 0.0
      %480 = vmatprep.subr.mxu0 0.0
      %481 = vmatpush1.msra.mxu0 0.0
      %482 = vmatprep.subr.mxu0 0.0
      %483 = vmatpush1.msra.mxu0 0.0
      %484 = vmatprep.subr.mxu0 0.0
      %485 = vmatpush1.msra.mxu0 0.0
      %486 = vmatprep.subr.mxu0 0.0
      %487 = vmatpush1.msra.mxu0 0.0
      %488 = vmatprep.subr.mxu0 0.0
      %489 = vmatpush1.msra.mxu0 0.0
      %490 = vmatprep.mubr.f32.mxu0 0.0
      %491 = vmatmul.mubr.f32.gmra.mrb[0].mxu0 %v232
      %v492 = vpop.f32.mrb[0].mxu0
      %v493 = vadd.f32 0.0, %v492
      %v494 = vpop.f32.mrb[0].mxu0
      %495 = vmatprep.mubr.f32.mxu0 0.0
      %496 = vmatmul.mubr.f32.gmra.mrb[0].mxu0 %v235
      %v497 = vpop.f32.mrb[0].mxu0
      %v498 = vadd.f32 0.0, %v497
      %v499 = vpop.f32.mrb[0].mxu0
      %500 = vdwg.mxu0
      %v501 = vpack.c.bf16 %v425, %v424
      %s502 = scalar_lea.vmem %s2, 32
      %v503 = vld [vmem:[%s502] sm:$0xff]
      %v504 = vld [vmem:[%s502 + $0x8] sm:$0xff]
      %v505 = vld [vmem:[%s502 + $0x10] sm:$0xff]
      %v506 = vld [vmem:[%s502 + $0x18] sm:$0xff]
      %v507 = vpack.c.bf16 %v504, %v503
      %v508 = vpack.c.bf16 %v506, %v505
      %v509 = vpack.c.bf16 %v498, %v493
      %s510 = scalar_lea.vmem %s3, 32
      %v511 = vld [vmem:[%s510] sm:$0xff]
      %v512 = vld [vmem:[%s510 + $0x8] sm:$0xff]
      %v513 = vld [vmem:[%s510 + $0x10] sm:$0xff]
      %v514 = vld [vmem:[%s510 + $0x18] sm:$0xff]
      %v515 = vpack.c.bf16 %v512, %v511
      %v516 = vpack.c.bf16 %v514, %v513
      %v518 = vsel %vm326, %v509, 0
      %520 = vmatprep.subr.bf16.mxu0 0
      %521 = vmatpush1.bf16.msra.mxu0 %v515
      %522 = vmatprep.subr.bf16.mxu0 0
      %523 = vmatpush1.bf16.msra.mxu0 %v516
      %524 = vmatprep.subr.bf16.mxu0 0
      %525 = vmatpush1.bf16.msra.mxu0 0
      %526 = vmatprep.subr.bf16.mxu0 0
      %527 = vmatpush1.bf16.msra.mxu0 0
      %528 = vmatprep.subr.bf16.mxu0 0
      %529 = vmatpush1.bf16.msra.mxu0 0
      %530 = vmatprep.subr.bf16.mxu0 0
      %531 = vmatpush1.bf16.msra.mxu0 0
      %532 = vmatprep.subr.bf16.mxu0 0
      %533 = vmatpush1.bf16.msra.mxu0 0
      %534 = vmatprep.subr.bf16.mxu0 0
      %535 = vmatpush1.bf16.msra.mxu0 0
      %536 = vmatprep.subr.bf16.mxu0 0
      %537 = vmatpush1.bf16.msra.mxu0 0
      %538 = vmatprep.subr.bf16.mxu0 0
      %539 = vmatpush1.bf16.msra.mxu0 0
      %540 = vmatprep.subr.bf16.mxu0 0
      %541 = vmatpush1.bf16.msra.mxu0 0
      %542 = vmatprep.subr.bf16.mxu0 0
      %543 = vmatpush1.bf16.msra.mxu0 0
      %544 = vmatprep.subr.bf16.mxu0 0
      %545 = vmatpush1.bf16.msra.mxu0 0
      %546 = vmatprep.subr.bf16.mxu0 0
      %547 = vmatpush1.bf16.msra.mxu0 0
      %548 = vmatprep.subr.bf16.mxu0 0
      %549 = vmatpush1.bf16.msra.mxu0 0
      %550 = vmatprep.subr.bf16.mxu0 0
      %551 = vmatpush1.bf16.msra.mxu0 0
      %552 = vmatprep.mubr.bf16.mxu0 0
      %553 = vmatmul.mubr.bf16.gmra.mrb[0].mxu0 %v518
      %v554 = vpop.f32.mrb[0].mxu0
      %v555 = vadd.f32 0.0, %v554
      %v556 = vpop.f32.mrb[0].mxu0
      %v557 = vpop.f32.mrb[0].mxu0
      %v558 = vadd.f32 0.0, %v557
      %v559 = vpop.f32.mrb[0].mxu0
      %560 = vdwg.mxu0
      %v562 = vsel %vm326, %v501, 0
      %564 = vmatprep.subr.bf16.mxu0 0
      %565 = vmatpush1.bf16.msra.mxu0 %v507
      %566 = vmatprep.subr.bf16.mxu0 0
      %567 = vmatpush1.bf16.msra.mxu0 %v508
      %568 = vmatprep.subr.bf16.mxu0 0
      %569 = vmatpush1.bf16.msra.mxu0 0
      %570 = vmatprep.subr.bf16.mxu0 0
      %571 = vmatpush1.bf16.msra.mxu0 0
      %572 = vmatprep.subr.bf16.mxu0 0
      %573 = vmatpush1.bf16.msra.mxu0 0
      %574 = vmatprep.subr.bf16.mxu0 0
      %575 = vmatpush1.bf16.msra.mxu0 0
      %576 = vmatprep.subr.bf16.mxu0 0
      %577 = vmatpush1.bf16.msra.mxu0 0
      %578 = vmatprep.subr.bf16.mxu0 0
      %579 = vmatpush1.bf16.msra.mxu0 0
      %580 = vmatprep.subr.bf16.mxu0 0
      %581 = vmatpush1.bf16.msra.mxu0 0
      %582 = vmatprep.subr.bf16.mxu0 0
      %583 = vmatpush1.bf16.msra.mxu0 0
      %584 = vmatprep.subr.bf16.mxu0 0
      %585 = vmatpush1.bf16.msra.mxu0 0
      %586 = vmatprep.subr.bf16.mxu0 0
      %587 = vmatpush1.bf16.msra.mxu0 0
      %588 = vmatprep.subr.bf16.mxu0 0
      %589 = vmatpush1.bf16.msra.mxu0 0
      %590 = vmatprep.subr.bf16.mxu0 0
      %591 = vmatpush1.bf16.msra.mxu0 0
      %592 = vmatprep.subr.bf16.mxu0 0
      %593 = vmatpush1.bf16.msra.mxu0 0
      %594 = vmatprep.subr.bf16.mxu0 0
      %595 = vmatpush1.bf16.msra.mxu0 0
      %596 = vmatprep.mubr.bf16.mxu0 0
      %597 = vmatmul.mubr.bf16.gmra.mrb[0].mxu0 %v562
      %v598 = vpop.f32.mrb[0].mxu0
      %v599 = vadd.f32 %v555, %v598
      %v600 = vpop.f32.mrb[0].mxu0
      %v601 = vpop.f32.mrb[0].mxu0
      %v602 = vadd.f32 %v558, %v601
      %v603 = vpop.f32.mrb[0].mxu0
      %604 = vdwg.mxu0
      %s605 = scalar_lea.vmem %s4, 1
      %v606 = vld [vmem:[%s605] sm:$0x1]
      %v608 = vlaneseq
      %v609 = vshrl.u32 %v608, 7
      %v610 = vsub.s32 0, %v609
      %v611 = vrot.slane %v606, %v610
      %v613 = vadd.f32 %v599, %v611
      %v614 = vadd.f32 %v602, %v611
      %615 = vst.msk [vmem:[%s224] sm:$0xff] %vm326, %v613
      %616 = vst.msk [vmem:[%s224 + $0x8] sm:$0xff] %vm326, %v614
      %p617 = scmp.lt.s32.totalorder %s16, 1
      %s618 = scalar_select %p617, %s16, 1
      %s619 = smul.addr %s618, 2
      %s620 = smul.addr %s619, 8
      %s621 = scalar_lea.vmem %s5, %s620
      // Predicated region
      $region41: #{graphsage_gebert_forward.4} parent=39 // pred_check
        %p622 = pneg %p144
      $region42: #{graphsage_gebert_forward.4} parent=39 // pred_check_branch
        %624 = sbr.rel (%p622) target = $region44
      $region43: #{graphsage_gebert_forward.4} parent=39 // pred_region
        _
      $region44: #{graphsage_gebert_forward.4} parent=39 // pred_fallthru
        _
    $region40: #{graphsage_gebert_forward.4} parent=5 // pred_fallthru
      _
    %p625 = scmp.le.s32.totalorder 2, %s11
    // Predicated region
    $region45: #{graphsage_gebert_forward.4} parent=5 // pred_check
      %p626 = pneg %p625
    $region46: #{graphsage_gebert_forward.4} parent=5 // pred_check_branch
      %628 = sbr.rel (%p626) target = $region48
    $region47: #{graphsage_gebert_forward.4} parent=5 // pred_region
      %s629 = ssub.s32 %s11, 2
      // Predicated region
      $region49: #{graphsage_gebert_forward.4} parent=47 // pred_check
        %p630 = pneg %p150
      $region50: #{graphsage_gebert_forward.4} parent=47 // pred_check_branch
        %632 = sbr.rel (%p630) target = $region52
      $region51: #{graphsage_gebert_forward.4} parent=47 // pred_region
        %p633 = scmp.lt.s32.totalorder %s17, 1
        %s634 = scalar_select %p633, %s17, 1
        %s635 = smul.addr %s634, 2
        %s636 = smul.addr %s635, 8
        %s637 = scalar_lea.vmem %s5, %s636
      $region52: #{graphsage_gebert_forward.4} parent=47 // pred_fallthru
        _
    $region48: #{graphsage_gebert_forward.4} parent=5 // pred_fallthru
      _
  $region6: #{graphsage_gebert_forward.4} parent=0 // loop_footer
    %s15 = sadd.s32 1, %s11
  $region7: #{graphsage_gebert_forward.4} parent=0 // loop_footer_branch
    %10 = sbr.rel target = $region3
  $region8: #{graphsage_gebert_forward.4} parent=0 // loop_exit
    _

// kernel: graphsage_gebert_forward.5
$region0: #{graphsage_gebert_forward.5}
  #allocation0 [shape = 'u32[]', space=smem, size = 0x4, offset = 0x4, fixed_abs, tag = 'smem constant byte address 0x4 - core index']
  #allocation1 [shape = 'u32[144,128]{1,0:T(1,128)}', space=vmem, size = 0x12000, scoped, tag = 'internal scratch']
  #allocation2 [shape = 'f32[16,32]{1,0:T(8,128)}', space=vmem, size = 0x2000, scoped, tag = 'scratch operand']
  #allocation3 [shape = 's32[1]{0}', space=sflag, size = 0x4, scoped, tag = 'scoped memory for graphsage_gebert_forward.5']
  #allocation4 [shape = 'u8[512]{0}', space=smem, size = 0x200, scoped, tag = 'prefetched SMEM operand 0']
  #allocation5 [shape = 'u8[512]{0}', space=smem, size = 0x200, scoped, tag = 'prefetched SMEM operand 1']
  %s0 = inlined_call_operand.vmem [shape: s32[4], index: 0, kind: input, shape index: {}]
  %s1 = inlined_call_operand.vmem [shape: s32[4], index: 1, kind: input, shape index: {}]
  %s2 = inlined_call_operand.vmem [shape: s32[16,1], index: 2, kind: input, shape index: {}]
  %s3 = inlined_call_operand.vmem [shape: s32[1,16], index: 3, kind: input, shape index: {}]
  %s4 = inlined_call_operand.vmem [shape: f32[4,16,32], index: 4, kind: input, shape index: {}, may-alias: {4,5}]
  %s5 = inlined_call_operand.vmem [shape: f32[4,16,32], index: 5, kind: input, shape index: {}, may-alias: {4,5}]
  %s6 = inlined_call_operand.vmem [shape: f32[4,1,1], index: 6, kind: output, shape index: {}]
  %s7 = sld [smem:[#allocation0]]
  $region49: #{graphsage_gebert_forward.5} parent=0
    _
  %s9 = ssub.s32 1, %s7
  %s10 = scalar_select 0, %s9, %s7
  %s11 = sshll.u32 %s0, 4
  %s12 = int_to_ptr.vmem [resolvable:$true] %s11
  %14 = dma.vmem_to_smem %s12, 16, [#allocation4], [#allocation3]
  %s15 = sshll.u32 %s1, 4
  %s16 = int_to_ptr.vmem [resolvable:$true] %s15
  %18 = dma.vmem_to_smem %s16, 16, [#allocation5], [#allocation3]
  %19 = dma.done [#allocation3], 32
  %20 = sfence
  loop: start=0, step=1, limit=6
  $region2: #{graphsage_gebert_forward.5} parent=0 // loop_pre_header
    _
  $region3: #{graphsage_gebert_forward.5} parent=0 // loop_header
    %s22 = sphi 0, %s26
    %p23 = scmp.ge.s32.totalorder %s22, 6
    %s30 = sphi 0, %s30
    %s32 = sphi 0, %s30
    %s33 = sphi 0, %s32
    %s47 = sphi 0, %s33
    %s51 = sphi 0, %s51
    %s53 = sphi 0, %s51
    %s54 = sphi 0, %s53
    %s68 = sphi 0, %s54
    %s76 = sphi 0, %s78
    %s79 = sphi 0, %s76
    %s80 = sphi 0, %s79
    %s96 = sphi 0, %s80
    %s104 = sphi 0, %s106
    %s107 = sphi 0, %s104
    %s108 = sphi 0, %s107
    %s124 = sphi 0, %s108
    %s130 = sphi 0, %s132
    %s133 = sphi 0, %s130
    %s134 = sphi 0, %s133
    %s150 = sphi 0, %s134
  $region4: #{graphsage_gebert_forward.5} parent=0 // loop_header_branch
    %25 = sbr.rel (%p23) target = $region8
  $region5: #{graphsage_gebert_forward.5} parent=0 // loop_body
    %s27 = ssub.s32 %s22, 1
    %s28 = ssub.s32 %s22, 2
    %s29 = sadd.s32 %s22, 1
    %s31 = sadd.s32 %s30, 1
    %p34 = scmp.eq.s32.totalorder %s22, 3
    %p35 = scmp.ne.s32.totalorder %s30, %s32
    %p36 = scmp.eq.s32.totalorder %s22, 0
    %p37 = por %p35, %p36
    %p38 = scmp.ne.s32.totalorder %s30, %s32
    %p39 = scmp.eq.s32.totalorder %s27, 3
    %p40 = por %p38, %p39
    %p41 = scmp.ne.s32.totalorder %s32, %s33
    %p42 = scmp.eq.s32.totalorder %s27, 0
    %p43 = por %p41, %p42
    %p44 = scmp.ne.s32.totalorder %s32, %s33
    %p45 = scmp.eq.s32.totalorder %s28, 3
    %p46 = por %p44, %p45
    %p48 = scmp.ne.s32.totalorder %s33, %s47
    %p49 = scmp.eq.s32.totalorder %s28, 0
    %p50 = por %p48, %p49
    %s52 = sadd.s32 %s51, 1
    %p55 = scmp.eq.s32.totalorder %s22, 3
    %p56 = scmp.ne.s32.totalorder %s51, %s53
    %p57 = scmp.eq.s32.totalorder %s22, 0
    %p58 = por %p56, %p57
    %p59 = scmp.ne.s32.totalorder %s51, %s53
    %p60 = scmp.eq.s32.totalorder %s27, 3
    %p61 = por %p59, %p60
    %p62 = scmp.ne.s32.totalorder %s53, %s54
    %p63 = scmp.eq.s32.totalorder %s27, 0
    %p64 = por %p62, %p63
    %p65 = scmp.ne.s32.totalorder %s53, %s54
    %p66 = scmp.eq.s32.totalorder %s28, 3
    %p67 = por %p65, %p66
    %p69 = scmp.ne.s32.totalorder %s54, %s68
    %p70 = scmp.eq.s32.totalorder %s28, 0
    %p71 = por %p69, %p70
    %s72 = sld [smem:[#allocation4 + %s22]]
    %s73 = sld [smem:[#allocation4 + %s29]]
    %s74 = ssub.s32 %s72, %s73
    %p75 = scmp.eq.s32.totalorder %s74, 0
    %s77 = sadd.s32 %s76, 1
    %s78 = scalar_select %p75, %s76, %s77
    %p81 = pneg %p75
    %p82 = scmp.eq.s32.totalorder %s22, 3
    %p83 = por %p81, %p82
    %p84 = scmp.ne.s32.totalorder %s76, %s79
    %p85 = scmp.eq.s32.totalorder %s22, 0
    %p86 = por %p84, %p85
    %p87 = scmp.ne.s32.totalorder %s76, %s79
    %p88 = scmp.eq.s32.totalorder %s27, 3
    %p89 = por %p87, %p88
    %p90 = scmp.ne.s32.totalorder %s79, %s80
    %p91 = scmp.eq.s32.totalorder %s27, 0
    %p92 = por %p90, %p91
    %p93 = scmp.ne.s32.totalorder %s79, %s80
    %p94 = scmp.eq.s32.totalorder %s28, 3
    %p95 = por %p93, %p94
    %p97 = scmp.ne.s32.totalorder %s80, %s96
    %p98 = scmp.eq.s32.totalorder %s28, 0
    %p99 = por %p97, %p98
    %s100 = sld [smem:[#allocation5 + %s22]]
    %s101 = sld [smem:[#allocation5 + %s29]]
    %s102 = ssub.s32 %s100, %s101
    %p103 = scmp.eq.s32.totalorder %s102, 0
    %s105 = sadd.s32 %s104, 1
    %s106 = scalar_select %p103, %s104, %s105
    %p109 = pneg %p103
    %p110 = scmp.eq.s32.totalorder %s22, 3
    %p111 = por %p109, %p110
    %p112 = scmp.ne.s32.totalorder %s104, %s107
    %p113 = scmp.eq.s32.totalorder %s22, 0
    %p114 = por %p112, %p113
    %p115 = scmp.ne.s32.totalorder %s104, %s107
    %p116 = scmp.eq.s32.totalorder %s27, 3
    %p117 = por %p115, %p116
    %p118 = scmp.ne.s32.totalorder %s107, %s108
    %p119 = scmp.eq.s32.totalorder %s27, 0
    %p120 = por %p118, %p119
    %p121 = scmp.ne.s32.totalorder %s107, %s108
    %p122 = scmp.eq.s32.totalorder %s28, 3
    %p123 = por %p121, %p122
    %p125 = scmp.ne.s32.totalorder %s108, %s124
    %p126 = scmp.eq.s32.totalorder %s28, 0
    %p127 = por %p125, %p126
    %s128 = ssub.s32 %s22, %s29
    %p129 = scmp.eq.s32.totalorder %s128, 0
    %s131 = sadd.s32 %s130, 1
    %s132 = scalar_select %p129, %s130, %s131
    %p135 = pneg %p129
    %p136 = scmp.eq.s32.totalorder %s22, 3
    %p137 = por %p135, %p136
    %p138 = scmp.ne.s32.totalorder %s130, %s133
    %p139 = scmp.eq.s32.totalorder %s22, 0
    %p140 = por %p138, %p139
    %p141 = scmp.ne.s32.totalorder %s130, %s133
    %p142 = scmp.eq.s32.totalorder %s27, 3
    %p143 = por %p141, %p142
    %p144 = scmp.ne.s32.totalorder %s133, %s134
    %p145 = scmp.eq.s32.totalorder %s27, 0
    %p146 = por %p144, %p145
    %p147 = scmp.ne.s32.totalorder %s133, %s134
    %p148 = scmp.eq.s32.totalorder %s28, 3
    %p149 = por %p147, %p148
    %p151 = scmp.ne.s32.totalorder %s134, %s150
    %p152 = scmp.eq.s32.totalorder %s28, 0
    %p153 = por %p151, %p152
    %p154 = scmp.le.s32.totalorder 1, %s22
    %p155 = scmp.lt.s32.totalorder %s22, 5
    %p156 = pnand %p154, %p155
    %p157 = pneg %p156
    // Predicated region
    $region9: #{graphsage_gebert_forward.5} parent=5 // pred_check
      _
    $region10: #{graphsage_gebert_forward.5} parent=5 // pred_check_branch
      %159 = sbr.rel (%p156) target = $region12
    $region11: #{graphsage_gebert_forward.5} parent=5 // pred_region
      %s160 = ssub.s32 %s22, 1
      // Predicated region
      $region13: #{graphsage_gebert_forward.5} parent=11 // pred_check
        %p161 = pneg %p43
      $region14: #{graphsage_gebert_forward.5} parent=11 // pred_check_branch
        %163 = sbr.rel (%p161) target = $region16
      $region15: #{graphsage_gebert_forward.5} parent=11 // pred_region
        _
      $region16: #{graphsage_gebert_forward.5} parent=11 // pred_fallthru
        _
      // Predicated region
      $region17: #{graphsage_gebert_forward.5} parent=11 // pred_check
        %p164 = pneg %p64
      $region18: #{graphsage_gebert_forward.5} parent=11 // pred_check_branch
        %166 = sbr.rel (%p164) target = $region20
      $region19: #{graphsage_gebert_forward.5} parent=11 // pred_region
        _
      $region20: #{graphsage_gebert_forward.5} parent=11 // pred_fallthru
        _
    $region12: #{graphsage_gebert_forward.5} parent=5 // pred_fallthru
      _
    %p167 = scmp.lt.s32.totalorder %s22, 4
    // Predicated region
    $region21: #{graphsage_gebert_forward.5} parent=5 // pred_check
      %p168 = pneg %p167
    $region22: #{graphsage_gebert_forward.5} parent=5 // pred_check_branch
      %170 = sbr.rel (%p168) target = $region24
    $region23: #{graphsage_gebert_forward.5} parent=5 // pred_region
      // Predicated region
      $region25: #{graphsage_gebert_forward.5} parent=23 // pred_check
        %p171 = pneg %p86
      $region26: #{graphsage_gebert_forward.5} parent=23 // pred_check_branch
        %173 = sbr.rel (%p171) target = $region28
      $region27: #{graphsage_gebert_forward.5} parent=23 // pred_region
        %s174 = sld [smem:[#allocation4 + %s22]]
        %p175 = scmp.lt.s32.totalorder %s174, 3
        %s176 = scalar_select %p175, %s174, 3
        %s177 = smul.addr %s176, 2
        %s178 = smul.addr %s177, 8
        %s179 = scalar_lea.vmem %s4, %s178
        %s180 = sld [smem:[#allocation4 + %s22]]
      $region28: #{graphsage_gebert_forward.5} parent=23 // pred_fallthru
        _
      // Predicated region
      $region29: #{graphsage_gebert_forward.5} parent=23 // pred_check
        %p181 = pneg %p114
      $region30: #{graphsage_gebert_forward.5} parent=23 // pred_check_branch
        %183 = sbr.rel (%p181) target = $region32
      $region31: #{graphsage_gebert_forward.5} parent=23 // pred_region
        %s184 = sld [smem:[#allocation5 + %s22]]
        %p185 = scmp.lt.s32.totalorder %s184, 3
        %s186 = scalar_select %p185, %s184, 3
        %s187 = smul.addr %s186, 2
        %s188 = smul.addr %s187, 8
        %s189 = scalar_lea.vmem %s5, %s188
        %s190 = sld [smem:[#allocation5 + %s22]]
      $region32: #{graphsage_gebert_forward.5} parent=23 // pred_fallthru
        _
    $region24: #{graphsage_gebert_forward.5} parent=5 // pred_fallthru
      _
    %p191 = scmp.le.s32.totalorder 1, %s22
    %p192 = scmp.lt.s32.totalorder %s22, 5
    %p193 = pnand %p191, %p192
    %p194 = pneg %p193
    // Predicated region
    $region33: #{graphsage_gebert_forward.5} parent=5 // pred_check
      _
    $region34: #{graphsage_gebert_forward.5} parent=5 // pred_check_branch
      %196 = sbr.rel (%p193) target = $region36
    $region35: #{graphsage_gebert_forward.5} parent=5 // pred_region
      %s197 = ssub.s32 %s22, 1
      %p198 = pneg %p43
      %p199 = pneg %p40
      %p200 = pneg %p64
      %p201 = pneg %p61
      %s202 = sld [smem:[#allocation4 + %s27]]
      %p203 = scmp.lt.s32.totalorder %s202, 3
      %s204 = scalar_select %p203, %s202, 3
      %s205 = smul.addr %s204, 2
      %s206 = smul.addr %s205, 8
      %s207 = scalar_lea.vmem %s4, %s206
      %p208 = pneg %p92
      %p209 = pneg %p89
      %s210 = sld [smem:[#allocation5 + %s27]]
      %p211 = scmp.lt.s32.totalorder %s210, 3
      %s212 = scalar_select %p211, %s210, 3
      %s213 = smul.addr %s212, 2
      %s214 = smul.addr %s213, 8
      %s215 = scalar_lea.vmem %s5, %s214
      %p216 = pneg %p120
      %p217 = pneg %p117
      %p218 = pneg %p146
      %p219 = pneg %p143
      %p220 = scmp.lt.s32.totalorder %s27, 3
      %s221 = scalar_select %p220, %s27, 3
      %s222 = scalar_lea.vmem %s6, %s221
      %s223 = sld [smem:[#allocation4 + %s27]]
      %p224 = scmp.lt.s32.totalorder %s223, 3
      %s225 = scalar_select %p224, %s223, 3
      %s226 = smul.addr %s225, 2
      %s227 = smul.addr %s226, 8
      %s228 = scalar_lea.vmem %s4, %s227
      %s229 = sld [smem:[#allocation4 + %s27]]
      %s230 = sld [smem:[#allocation5 + %s27]]
      %p231 = scmp.lt.s32.totalorder %s230, 3
      %s232 = scalar_select %p231, %s230, 3
      %s233 = smul.addr %s232, 2
      %s234 = smul.addr %s233, 8
      %s235 = scalar_lea.vmem %s5, %s234
      %s236 = sld [smem:[#allocation5 + %s27]]
      %p237 = scmp.lt.s32.totalorder %s27, 3
      %s238 = scalar_select %p237, %s27, 3
      %s239 = scalar_lea.vmem %s6, %s238
      %v240 = vld [vmem:[%s228] sm:$0xff]
      %vm241 = vcmask 261120
      %242 = vst.msk [vmem:[#allocation2] sm:$0xff] %vm241, %v240
      %v243 = vld [vmem:[%s235] sm:$0xff]
      %244 = vst.msk [vmem:[#allocation2 + $0x8] sm:$0xff] %vm241, %v243
      %v245 = vld [vmem:[#allocation2] sm:$0xff]
      %v246 = vld [vmem:[#allocation2 + $0x8] sm:$0xff]
      %v247 = vmul.f32 %v245, %v245
      %v248 = vmul.f32 %v246, %v246
      %v249 = vsel %vm241, %v247, 0.0
      %250 = vadd.xlane.f32.xlu0 %v249
      %v251 = vpop.xlane.xlu0 %250
      %v252 = vsel %vm241, %v248, 0.0
      %253 = vadd.xlane.f32.xlu0 %v252
      %v254 = vpop.xlane.xlu0 %253
      %v255 = vadd.f32 %v251, 1e-12
      %v256 = vadd.f32 %v254, 1e-12
      %v257 = vrsqrt.pop %v255
      %v258 = vrsqrt.pop %v256
      %v259 = vmul.f32 %v245, %v257
      %v260 = vmul.f32 %v246, %v258
      %v262 = vsel %vm241, %v259, 0
      %v265 = vsel %vm241, %v260, 0
      %267 = vmatprep.subr.mxu0 0.0
      %268 = vmatpush1.xpose.msra.mxu0 %v262
      %269 = vmatprep.subr.mxu0 0.0
      %270 = vmatpush1.xpose.msra.mxu0 %v265
      %271 = vmatprep.subr.mxu0 0.0
      %272 = vmatpush1.xpose.msra.mxu0 0.0
      %273 = vmatprep.subr.mxu0 0.0
      %274 = vmatpush1.xpose.msra.mxu0 0.0
      %275 = vmatprep.subr.mxu0 0.0
      %276 = vmatpush1.xpose.msra.mxu0 0.0
      %277 = vmatprep.subr.mxu0 0.0
      %278 = vmatpush1.xpose.msra.mxu0 0.0
      %279 = vmatprep.subr.mxu0 0.0
      %280 = vmatpush1.xpose.msra.mxu0 0.0
      %281 = vmatprep.subr.mxu0 0.0
      %282 = vmatpush1.xpose.msra.mxu0 0.0
      %283 = vmatprep.subr.mxu0 0.0
      %284 = vmatpush1.xpose.msra.mxu0 0.0
      %285 = vmatprep.subr.mxu0 0.0
      %286 = vmatpush1.xpose.msra.mxu0 0.0
      %287 = vmatprep.subr.mxu0 0.0
      %288 = vmatpush1.xpose.msra.mxu0 0.0
      %289 = vmatprep.subr.mxu0 0.0
      %290 = vmatpush1.xpose.msra.mxu0 0.0
      %291 = vmatprep.subr.mxu0 0.0
      %292 = vmatpush1.xpose.msra.mxu0 0.0
      %293 = vmatprep.subr.mxu0 0.0
      %294 = vmatpush1.xpose.msra.mxu0 0.0
      %295 = vmatprep.subr.mxu0 0.0
      %296 = vmatpush1.xpose.msra.mxu0 0.0
      %297 = vmatprep.subr.mxu0 0.0
      %298 = vmatpush1.xpose.msra.mxu0 0.0
      %299 = vmatprep.subr.mxu0 0.0
      %300 = vmatpush1.xpose.msra.mxu0 0.0
      %301 = vmatprep.subr.mxu0 0.0
      %302 = vmatpush1.xpose.msra.mxu0 0.0
      %303 = vmatprep.subr.mxu0 0.0
      %304 = vmatpush1.xpose.msra.mxu0 0.0
      %305 = vmatprep.subr.mxu0 0.0
      %306 = vmatpush1.xpose.msra.mxu0 0.0
      %307 = vmatprep.subr.mxu0 0.0
      %308 = vmatpush1.xpose.msra.mxu0 0.0
      %309 = vmatprep.subr.mxu0 0.0
      %310 = vmatpush1.xpose.msra.mxu0 0.0
      %311 = vmatprep.subr.mxu0 0.0
      %312 = vmatpush1.xpose.msra.mxu0 0.0
      %313 = vmatprep.subr.mxu0 0.0
      %314 = vmatpush1.xpose.msra.mxu0 0.0
      %315 = vmatprep.subr.mxu0 0.0
      %316 = vmatpush1.xpose.msra.mxu0 0.0
      %317 = vmatprep.subr.mxu0 0.0
      %318 = vmatpush1.xpose.msra.mxu0 0.0
      %319 = vmatprep.subr.mxu0 0.0
      %320 = vmatpush1.xpose.msra.mxu0 0.0
      %321 = vmatprep.subr.mxu0 0.0
      %322 = vmatpush1.xpose.msra.mxu0 0.0
      %323 = vmatprep.subr.mxu0 0.0
      %324 = vmatpush1.xpose.msra.mxu0 0.0
      %325 = vmatprep.subr.mxu0 0.0
      %326 = vmatpush1.xpose.msra.mxu0 0.0
      %327 = vmatprep.subr.mxu0 0.0
      %328 = vmatpush1.xpose.msra.mxu0 0.0
      %329 = vmatprep.subr.mxu0 0.0
      %330 = vmatpush1.xpose.msra.mxu0 0.0
      %331 = vmatprep.mubr.f32.mxu0 0.0
      %332 = vmatmul.mubr.f32.gmra.mrb[0].mxu0 %v262
      %v333 = vpop.f32.mrb[0].mxu0
      %v334 = vadd.f32 0.0, %v333
      %v335 = vpop.f32.mrb[0].mxu0
      %336 = vmatprep.mubr.f32.mxu0 0.0
      %337 = vmatmul.mubr.f32.gmra.mrb[0].mxu0 %v265
      %v338 = vpop.f32.mrb[0].mxu0
      %v339 = vadd.f32 0.0, %v338
      %v340 = vpop.f32.mrb[0].mxu0
      %341 = vdwg.mxu0
      %v342 = vld [vmem:[%s2] sm:$0xff]
      %v343 = vld [vmem:[%s2 + $0x8] sm:$0xff]
      %v344 = vld [vmem:[%s3] sm:$0x1]
      %345 = vset.pattern.permute.xlu0 0
      %346 = vperm.xlu0 %345, %v342
      %v347 = vpop.permute.xlu0 %346
      %348 = vset.pattern.permute.xlu0 0
      %349 = vperm.xlu0 %348, %v343
      %v350 = vpop.permute.xlu0 %349
      %v351 = vlaneseq
      %v352 = vshrl.u32 %v351, 7
      %v353 = vsub.s32 0, %v352
      %v354 = vrot.slane %v344, %v353
      %vm355 = vcmp.eq.s32.totalorder %v347, %v354
      %vm356 = vcmp.eq.s32.totalorder %v350, %v354
      %v357 = vlaneseq
      %v358 = vshrl.u32 %v357, 7
      %v359 = vadd.s32 %v358, 8
      %v360 = vlaneseq
      %v361 = vand.u32 %v360, 127
      %vm362 = vcmp.eq.s32.totalorder %v358, %v361
      %vm363 = vcmp.eq.s32.totalorder %v359, %v361
      %vm364 = vmxor %vm362, 1
      %vm365 = vmxor %vm363, 1
      %vm366 = vmand %vm355, %vm364
      %vm367 = vmand %vm356, %vm365
      %vm368 = vmxor %vm355, 1
      %vm369 = vmxor %vm356, 1
      %v370 = vsub.f32 %v334, 0.5
      %v371 = vsub.f32 %v339, 0.5
      %v372 = vmul.f32 %v370, -2.0
      %v373 = vmul.f32 %v371, -2.0
      %v374 = vmul.f32 %v372, 1.442695
      %v375 = vpow.pop %v374
      %v376 = vmul.f32 %v373, 1.442695
      %v377 = vpow.pop %v376
      %v378 = vsel %vm366, %v375, 0.0
      %v379 = vsel %vm367, %v377, 0.0
      %vm380 = vcmask 130048
      %v381 = vsel %vm380, %v378, 0.0
      %382 = vadd.xlane.f32.xlu0 %v381
      %v383 = vpop.xlane.xlu0 %382
      %v384 = vsel %vm380, %v379, 0.0
      %385 = vadd.xlane.f32.xlu0 %v384
      %v386 = vpop.xlane.xlu0 %385
      %v387 = vmul.f32 %v370, 50.0
      %v388 = vmul.f32 %v371, 50.0
      %v389 = vmul.f32 %v387, 1.442695
      %v390 = vpow.pop %v389
      %v391 = vmul.f32 %v388, 1.442695
      %v392 = vpow.pop %v391
      %v393 = vsel %vm368, %v390, 0.0
      %v394 = vsel %vm369, %v392, 0.0
      %v395 = vsel %vm380, %v393, 0.0
      %396 = vadd.xlane.f32.xlu0 %v395
      %v397 = vpop.xlane.xlu0 %396
      %v398 = vsel %vm380, %v394, 0.0
      %399 = vadd.xlane.f32.xlu0 %v398
      %v400 = vpop.xlane.xlu0 %399
      %v401 = vadd.f32 %v383, 1.0
      %v402 = vadd.f32 %v386, 1.0
      %v403 = vlog2.pop %v401
      %v404 = vmul.f32 %v403, 0.6931472
      %v405 = vlog2.pop %v402
      %v406 = vmul.f32 %v405, 0.6931472
      %v407 = vrcp.pop 2.0
      %v408 = vmul.f32 %v404, %v407
      %v409 = vmul.f32 %v406, %v407
      %v410 = vadd.f32 %v397, 1.0
      %v411 = vadd.f32 %v400, 1.0
      %v412 = vlog2.pop %v410
      %v413 = vmul.f32 %v412, 0.6931472
      %v414 = vlog2.pop %v411
      %v415 = vmul.f32 %v414, 0.6931472
      %v416 = vrcp.pop 50.0
      %v417 = vmul.f32 %v413, %v416
      %v418 = vmul.f32 %v415, %v416
      %v419 = vadd.f32 %v408, %v417
      %v420 = vadd.f32 %v409, %v418
      %v421 = vadd.f32 %v419, %v420
      %v422 = vrot.slane %v421, 4
      %v423 = vadd.f32 %v421, %v422
      %v424 = vrot.slane %v423, 2
      %v425 = vadd.f32 %v423, %v424
      %v426 = vrot.slane %v425, 1
      %v427 = vadd.f32 %v425, %v426
      %v428 = vrcp.pop 16.0
      %v429 = vmul.f32 %v427, %v428
      %vm430 = vcmask 0
      %431 = vst.msk [vmem:[%s239] sm:$0x1] %vm430, %v429
      %p432 = scmp.lt.s32.totalorder %s27, 3
      %s433 = scalar_select %p432, %s27, 3
      %s434 = scalar_lea.vmem %s6, %s433
      // Predicated region
      $region37: #{graphsage_gebert_forward.5} parent=35 // pred_check
        %p435 = pneg %p143
      $region38: #{graphsage_gebert_forward.5} parent=35 // pred_check_branch
        %437 = sbr.rel (%p435) target = $region40
      $region39: #{graphsage_gebert_forward.5} parent=35 // pred_region
        _
      $region40: #{graphsage_gebert_forward.5} parent=35 // pred_fallthru
        _
    $region36: #{graphsage_gebert_forward.5} parent=5 // pred_fallthru
      _
    %p438 = scmp.le.s32.totalorder 2, %s22
    // Predicated region
    $region41: #{graphsage_gebert_forward.5} parent=5 // pred_check
      %p439 = pneg %p438
    $region42: #{graphsage_gebert_forward.5} parent=5 // pred_check_branch
      %441 = sbr.rel (%p439) target = $region44
    $region43: #{graphsage_gebert_forward.5} parent=5 // pred_region
      %s442 = ssub.s32 %s22, 2
      // Predicated region
      $region45: #{graphsage_gebert_forward.5} parent=43 // pred_check
        %p443 = pneg %p149
      $region46: #{graphsage_gebert_forward.5} parent=43 // pred_check_branch
        %445 = sbr.rel (%p443) target = $region48
      $region47: #{graphsage_gebert_forward.5} parent=43 // pred_region
        %p446 = scmp.lt.s32.totalorder %s28, 3
        %s447 = scalar_select %p446, %s28, 3
        %s448 = scalar_lea.vmem %s6, %s447
      $region48: #{graphsage_gebert_forward.5} parent=43 // pred_fallthru
        _
    $region44: #{graphsage_gebert_forward.5} parent=5 // pred_fallthru
      _
  $region6: #{graphsage_gebert_forward.5} parent=0 // loop_footer
    %s26 = sadd.s32 1, %s22
  $region7: #{graphsage_gebert_forward.5} parent=0 // loop_footer_branch
    %21 = sbr.rel target = $region3
  $region8: #{graphsage_gebert_forward.5} parent=0 // loop_exit
    _

</llo_original>
